<compile_context>
chip_gen: v7x
topology: tpu7x:2x2x1
jax: 0.10.0
libtpu: 0.0.40
codegen_flags: <defaults>
</compile_context>

<pallas_src>
import math
from functools import partial

import jax
import jax.numpy as jnp
from jax import lax
from jax.experimental import pallas as pl
from jax.experimental.pallas import tpu as pltpu

EPS = 1e-5  # PyTorch nn.LayerNorm default


# ----------------------------- in-kernel helpers -----------------------------
def _layernorm(x, gamma, beta):
    mu = jnp.mean(x, axis=-1, keepdims=True)
    var = jnp.mean((x - mu) ** 2, axis=-1, keepdims=True)
    return (x - mu) * lax.rsqrt(var + EPS) * gamma + beta


def _gelu_tanh(x):
    c = math.sqrt(2.0 / math.pi)
    return 0.5 * x * (1.0 + jnp.tanh(c * (x + 0.044715 * x ** 3)))


# ------------------------------ decoder block kernel --------------------------
def decoder_block_kernel(x_ref, g1_ref, b1_ref, wqkv_ref, bqkv_ref,
                         wproj_ref, bproj_ref, g2_ref, b2_ref,
                         wff1_ref, bff1_ref, wff2_ref, bff2_ref,
                         o_ref, attn_sc, *, n_heads):
    x = x_ref[0]                                  # (T, C) f32 residual stream
    T, C = x.shape
    hs = C // n_heads

    # --- multi-head causal self-attention on ln1(x) ---
    xn = _layernorm(x, g1_ref[0], b1_ref[0])
    qkv = jnp.dot(xn.astype(jnp.bfloat16), wqkv_ref[...],          # bf16 MXU
                  preferred_element_type=jnp.float32) + bqkv_ref[0]
    # lane-aligned grouped layout: [Q_all | K_all | V_all]
    q_all = qkv[:, :C]
    k_all = qkv[:, C:2 * C]
    v_all = qkv[:, 2 * C:]

    # causal mask built once, reused for every head
    rows = lax.broadcasted_iota(jnp.int32, (T, T), 0)
    cols = lax.broadcasted_iota(jnp.int32, (T, T), 1)
    causal = rows >= cols
    scale = 1.0 / math.sqrt(hs)                   # k.shape[-1] ** 0.5

    for h in range(n_heads):                      # static unroll; n_heads small
        lo, hi = h * hs, (h + 1) * hs
        q = q_all[:, lo:hi].astype(jnp.bfloat16)
        k = k_all[:, lo:hi].astype(jnp.bfloat16)
        v = v_all[:, lo:hi].astype(jnp.bfloat16)
        # scores without materializing k.T: contract last dims
        s = lax.dot_general(q, k, (((1,), (1,)), ((), ())),
                            preferred_element_type=jnp.float32) * scale
        s = jnp.where(causal, s, -1.0e9)
        s = s - jnp.max(s, axis=-1, keepdims=True)
        p = jnp.exp(s)
        inv = pl.reciprocal(jnp.sum(p, axis=-1, keepdims=True), approx=True)
        p = p * inv
        attn_sc[:, lo:hi] = jnp.dot(p.astype(jnp.bfloat16), v,
                                    preferred_element_type=jnp.float32)

    attn = jnp.dot(attn_sc[...].astype(jnp.bfloat16), wproj_ref[...],
                   preferred_element_type=jnp.float32) + bproj_ref[0]
    x = x + attn                                  # dropout1 = identity (eval)

    # --- feed-forward on ln2(x) ---
    xn2 = _layernorm(x, g2_ref[0], b2_ref[0])
    h1 = jnp.dot(xn2.astype(jnp.bfloat16), wff1_ref[...],
                 preferred_element_type=jnp.float32) + bff1_ref[0]
    h1 = _gelu_tanh(h1)
    h2 = jnp.dot(h1.astype(jnp.bfloat16), wff2_ref[...],
                 preferred_element_type=jnp.float32) + bff2_ref[0]
    o_ref[0] = x + h2                             # dropout2 = identity (eval)


# ------------------------------ lm-head kernel --------------------------------
def lm_head_kernel(x_ref, g_ref, b_ref, embt_ref, o_ref):
    xn = _layernorm(x_ref[0], g_ref[0], b_ref[0])           # f32
    # tied weights, pre-transposed to (C, TILE_V) bf16 -> no in-kernel .T
    o_ref[0] = jnp.dot(xn.astype(jnp.bfloat16), embt_ref[...],
                       preferred_element_type=jnp.float32)


# ------------------------------- wrappers -------------------------------------
def decoder_block(x, p, n_heads):
    B, T, C = x.shape

    def full_spec(a):                             # whole array resident
        nd = a.ndim
        return pl.BlockSpec(a.shape, lambda b, _nd=nd: (0,) * _nd)

    args = (x, p["g1"], p["b1"], p["wqkv"], p["bqkv"], p["wproj"], p["bproj"],
            p["g2"], p["b2"], p["wff1"], p["bff1"], p["wff2"], p["bff2"])
    in_specs = ([pl.BlockSpec((1, T, C), lambda b: (b, 0, 0))]
                + [full_spec(a) for a in args[1:]])
    return pl.pallas_call(
        partial(decoder_block_kernel, n_heads=n_heads),
        out_shape=jax.ShapeDtypeStruct((B, T, C), jnp.float32),
        grid=(B,),
        in_specs=in_specs,
        out_specs=pl.BlockSpec((1, T, C), lambda b: (b, 0, 0)),
        scratch_shapes=[pltpu.VMEM((T, C), jnp.float32)],
        compiler_params=pltpu.CompilerParams(dimension_semantics=("parallel",)),
    )(*args)


def lm_head(x, gamma, beta, emb_t, tile_v=2048):
    B, T, C = x.shape
    V = emb_t.shape[1]
    tv = V if V <= tile_v else tile_v             # vocab tile (lane-dense)
    assert V % tv == 0
    nv = V // tv
    return pl.pallas_call(
        lm_head_kernel,
        out_shape=jax.ShapeDtypeStruct((B, T, V), jnp.float32),
        grid=(B, nv),
        in_specs=[
            pl.BlockSpec((1, T, C), lambda b, v: (b, 0, 0)),
            pl.BlockSpec(gamma.shape, lambda b, v: (0, 0)),
            pl.BlockSpec(beta.shape, lambda b, v: (0, 0)),
            pl.BlockSpec((C, tv), lambda b, v: (0, v)),
        ],
        out_specs=pl.BlockSpec((1, T, tv), lambda b, v: (b, 0, v)),
        compiler_params=pltpu.CompilerParams(
            dimension_semantics=("parallel", "parallel")),
    )(x, gamma, beta, emb_t)


# ------------------------- parameters & glue (plain JAX) ----------------------
def positional_encoding(seq_len, n_embd):
    pos = jnp.arange(seq_len, dtype=jnp.float32)[:, None]
    div = 10000.0 ** (jnp.arange(0, n_embd, 2, dtype=jnp.float32) / n_embd)
    pe = jnp.zeros((seq_len, n_embd), dtype=jnp.float32)
    pe = pe.at[:, 0::2].set(jnp.sin(pos / div))
    pe = pe.at[:, 1::2].set(jnp.cos(pos / div))
    return pe


def init_params(key, vocab_size, n_embd, n_heads, n_layers):
    def nrm(k, shape, s=0.02):
        return (s * jax.random.normal(k, shape)).astype(jnp.float32)

    keys = jax.random.split(key, 3 + 12 * n_layers)
    ki = iter(keys)
    emb = nrm(next(ki), (vocab_size, n_embd))                 # f32 master copy
    layers = []
    for _ in range(n_layers):
        layers.append(dict(
            g1=1.0 + nrm(next(ki), (1, n_embd), 0.1),
            b1=nrm(next(ki), (1, n_embd), 0.05),
            # grouped [Q | K | V] column layout, stored bf16 for the MXU
            wqkv=nrm(next(ki), (n_embd, 3 * n_embd)).astype(jnp.bfloat16),
            bqkv=nrm(next(ki), (1, 3 * n_embd), 0.01),
            wproj=nrm(next(ki), (n_embd, n_embd)).astype(jnp.bfloat16),
            bproj=nrm(next(ki), (1, n_embd), 0.01),
            g2=1.0 + nrm(next(ki), (1, n_embd), 0.1),
            b2=nrm(next(ki), (1, n_embd), 0.05),
            wff1=nrm(next(ki), (n_embd, 4 * n_embd)).astype(jnp.bfloat16),
            bff1=nrm(next(ki), (1, 4 * n_embd), 0.01),
            wff2=nrm(next(ki), (4 * n_embd, n_embd)).astype(jnp.bfloat16),
            bff2=nrm(next(ki), (1, n_embd), 0.01),
        ))
    ln_g = 1.0 + nrm(next(ki), (1, n_embd), 0.1)
    ln_b = nrm(next(ki), (1, n_embd), 0.05)
    return dict(emb=emb, layers=layers, ln_g=ln_g, ln_b=ln_b)


def language_model_forward(tokens, params, n_heads, seq_len):
    B, T = tokens.shape
    C = params["emb"].shape[1]
    x = jnp.take(params["emb"], tokens, axis=0) * math.sqrt(C)  # emb * sqrt(C)
    x = x + positional_encoding(seq_len, C)[:T, :]
    for lp in params["layers"]:
        x = decoder_block(x, lp, n_heads)
    # tied lm_head: pre-transpose once outside the kernel, bf16 for DMA/MXU
    emb_t = params["emb"].T.astype(jnp.bfloat16)                # (C, V)
    return lm_head(x, params["ln_g"], params["ln_b"], emb_t)


# ------------------------------ pure-JAX reference ----------------------------
def _ref_ln(x, g, b):
    mu = jnp.mean(x, -1, keepdims=True)
    var = jnp.mean((x - mu) ** 2, -1, keepdims=True)
    return (x - mu) / jnp.sqrt(var + EPS) * g + b


def ref_forward(tokens, params, n_heads, seq_len):
    B, T = tokens.shape
    C = params["emb"].shape[1]
    hs = C // n_heads
    f32 = lambda a: a.astype(jnp.float32)
    x = jnp.take(params["emb"], tokens, axis=0) * math.sqrt(C)
    x = x + positional_encoding(seq_len, C)[:T, :]
    causal = jnp.tril(jnp.ones((T, T), dtype=bool))
    for p in params["layers"]:
        xn = _ref_ln(x, p["g1"][0], p["b1"][0])
        qkv = xn @ f32(p["wqkv"]) + p["bqkv"][0]
        q_all, k_all, v_all = qkv[..., :C], qkv[..., C:2 * C], qkv[..., 2 * C:]
        q = q_all.reshape(B, T, n_heads, hs).transpose(0, 2, 1, 3)
        k = k_all.reshape(B, T, n_heads, hs).transpose(0, 2, 1, 3)
        v = v_all.reshape(B, T, n_heads, hs).transpose(0, 2, 1, 3)
        s = (q @ jnp.swapaxes(k, -1, -2)) / math.sqrt(hs)
        s = jnp.where(causal, s, -1.0e9)
        a = jax.nn.softmax(s, axis=-1)
        out = (a @ v).transpose(0, 2, 1, 3).reshape(B, T, C)
        x = x + (out @ f32(p["wproj"]) + p["bproj"][0])
        xn2 = _ref_ln(x, p["g2"][0], p["b2"][0])
        h = xn2 @ f32(p["wff1"]) + p["bff1"][0]
        h = 0.5 * h * (1 + jnp.tanh(math.sqrt(2 / math.pi) * (h + 0.044715 * h ** 3)))
        x = x + (h @ f32(p["wff2"]) + p["bff2"][0])
    xn = _ref_ln(x, params["ln_g"][0], params["ln_b"][0])
    return xn @ params["emb"].T


# ----------------------------------- main -------------------------------------
if __name__ == "__main__":
    # small but lane-dense dims: C multiple of 128, V multiple of 128, T mult of 8
    vocab_size, seq_len, n_embd, n_heads, n_layers = 256, 16, 128, 4, 2
    B, T = 2, 16

    key = jax.random.PRNGKey(0)
    kp, kt = jax.random.split(key)
    params = init_params(kp, vocab_size, n_embd, n_heads, n_layers)
    tokens = jax.random.randint(kt, (B, T), 0, vocab_size, dtype=jnp.int32)

    logits = language_model_forward(tokens, params, n_heads, seq_len)
    logits = jax.block_until_ready(logits)
    assert logits.shape == (B, T, vocab_size)

    ref = jax.block_until_ready(ref_forward(tokens, params, n_heads, seq_len))
    max_err = jnp.max(jnp.abs(logits - ref))
    # bf16 matmul operands + approx reciprocal => relaxed (but still tight) tol
    assert jnp.allclose(logits, ref, rtol=2e-2, atol=2e-2), f"max abs err {max_err}"

    print("KERNEL_OK")
</pallas_src>

<mosaic_0001>
module attributes {stable_mosaic.version = 11 : i64} {
  func.func @decoder_block_kernel(%arg0: i32, %arg1: memref<1x16x128xf32, #tpu.memory_space<vmem>>, %arg2: memref<1x128xf32, #tpu.memory_space<vmem>>, %arg3: memref<1x128xf32, #tpu.memory_space<vmem>>, %arg4: memref<128x384xbf16, #tpu.memory_space<vmem>>, %arg5: memref<1x384xf32, #tpu.memory_space<vmem>>, %arg6: memref<128x128xbf16, #tpu.memory_space<vmem>>, %arg7: memref<1x128xf32, #tpu.memory_space<vmem>>, %arg8: memref<1x128xf32, #tpu.memory_space<vmem>>, %arg9: memref<1x128xf32, #tpu.memory_space<vmem>>, %arg10: memref<128x512xbf16, #tpu.memory_space<vmem>>, %arg11: memref<1x512xf32, #tpu.memory_space<vmem>>, %arg12: memref<512x128xbf16, #tpu.memory_space<vmem>>, %arg13: memref<1x128xf32, #tpu.memory_space<vmem>>, %arg14: memref<1x16x128xf32, #tpu.memory_space<vmem>>, %arg15: memref<16x128xf32, #tpu.memory_space<vmem>>) attributes {dimension_semantics = [#tpu.dimension_semantics<parallel>], iteration_bounds = array<i64: 2>, scalar_prefetch = 0 : i64, scratch_operands = 1 : i64, tpu.core_type = #tpu.core_type<tc>, window_params = [{transform_indices = @transform_0, window_bounds = array<i64: 1, 16, 128>}, {pipeline_mode = #tpu.pipeline_mode<synchronous>, transform_indices = @transform_1, window_bounds = array<i64: 1, 128>}, {pipeline_mode = #tpu.pipeline_mode<synchronous>, transform_indices = @transform_2, window_bounds = array<i64: 1, 128>}, {pipeline_mode = #tpu.pipeline_mode<synchronous>, transform_indices = @transform_3, window_bounds = array<i64: 128, 384>}, {pipeline_mode = #tpu.pipeline_mode<synchronous>, transform_indices = @transform_4, window_bounds = array<i64: 1, 384>}, {pipeline_mode = #tpu.pipeline_mode<synchronous>, transform_indices = @transform_5, window_bounds = array<i64: 128, 128>}, {pipeline_mode = #tpu.pipeline_mode<synchronous>, transform_indices = @transform_6, window_bounds = array<i64: 1, 128>}, {pipeline_mode = #tpu.pipeline_mode<synchronous>, transform_indices = @transform_7, window_bounds = array<i64: 1, 128>}, {pipeline_mode = #tpu.pipeline_mode<synchronous>, transform_indices = @transform_8, window_bounds = array<i64: 1, 128>}, {pipeline_mode = #tpu.pipeline_mode<synchronous>, transform_indices = @transform_9, window_bounds = array<i64: 128, 512>}, {pipeline_mode = #tpu.pipeline_mode<synchronous>, transform_indices = @transform_10, window_bounds = array<i64: 1, 512>}, {pipeline_mode = #tpu.pipeline_mode<synchronous>, transform_indices = @transform_11, window_bounds = array<i64: 512, 128>}, {pipeline_mode = #tpu.pipeline_mode<synchronous>, transform_indices = @transform_12, window_bounds = array<i64: 1, 128>}, {transform_indices = @transform_13, window_bounds = array<i64: 1, 16, 128>}]} {
    %c0 = arith.constant 0 : index
    %c0_0 = arith.constant 0 : index
    %c0_1 = arith.constant 0 : index
    %0 = vector.load %arg1[%c0, %c0_0, %c0_1] : memref<1x16x128xf32, #tpu.memory_space<vmem>>, vector<1x16x128xf32>
    %1 = vector.shape_cast %0 : vector<1x16x128xf32> to vector<16x128xf32>
    %c0_2 = arith.constant 0 : index
    %c0_3 = arith.constant 0 : index
    %2 = vector.load %arg2[%c0_2, %c0_3] : memref<1x128xf32, #tpu.memory_space<vmem>>, vector<1x128xf32>
    %3 = vector.shape_cast %2 : vector<1x128xf32> to vector<128xf32>
    %c0_4 = arith.constant 0 : index
    %c0_5 = arith.constant 0 : index
    %4 = vector.load %arg3[%c0_4, %c0_5] : memref<1x128xf32, #tpu.memory_space<vmem>>, vector<1x128xf32>
    %5 = vector.shape_cast %4 : vector<1x128xf32> to vector<128xf32>
    %cst = arith.constant dense<0.000000e+00> : vector<16xf32>
    %6 = vector.multi_reduction <add>, %1, %cst [1] : vector<16x128xf32> to vector<16xf32>
    %7 = vector.shape_cast %6 : vector<16xf32> to vector<16x1xf32>
    %cst_6 = arith.constant 1.280000e+02 : f32
    %8 = vector.broadcast %cst_6 : f32 to vector<16x1xf32>
    %9 = arith.divf %7, %8 : vector<16x1xf32>
    %10 = vector.broadcast %9 : vector<16x1xf32> to vector<16x128xf32>
    %11 = arith.subf %1, %10 : vector<16x128xf32>
    %12 = arith.mulf %11, %11 : vector<16x128xf32>
    %cst_7 = arith.constant dense<0.000000e+00> : vector<16xf32>
    %13 = vector.multi_reduction <add>, %12, %cst_7 [1] : vector<16x128xf32> to vector<16xf32>
    %14 = vector.shape_cast %13 : vector<16xf32> to vector<16x1xf32>
    %cst_8 = arith.constant 1.280000e+02 : f32
    %15 = vector.broadcast %cst_8 : f32 to vector<16x1xf32>
    %16 = arith.divf %14, %15 : vector<16x1xf32>
    %17 = vector.broadcast %9 : vector<16x1xf32> to vector<16x128xf32>
    %18 = arith.subf %1, %17 : vector<16x128xf32>
    %cst_9 = arith.constant 9.99999974E-6 : f32
    %19 = vector.broadcast %cst_9 : f32 to vector<16x1xf32>
    %20 = arith.addf %16, %19 : vector<16x1xf32>
    %21 = math.rsqrt %20 : vector<16x1xf32>
    %22 = vector.broadcast %21 : vector<16x1xf32> to vector<16x128xf32>
    %23 = arith.mulf %18, %22 : vector<16x128xf32>
    %24 = vector.shape_cast %3 : vector<128xf32> to vector<1x128xf32>
    %25 = vector.broadcast %24 : vector<1x128xf32> to vector<16x128xf32>
    %26 = arith.mulf %23, %25 : vector<16x128xf32>
    %27 = vector.shape_cast %5 : vector<128xf32> to vector<1x128xf32>
    %28 = vector.broadcast %27 : vector<1x128xf32> to vector<16x128xf32>
    %29 = arith.addf %26, %28 : vector<16x128xf32>
    %30 = arith.truncf %29 : vector<16x128xf32> to vector<16x128xbf16>
    %c0_10 = arith.constant 0 : index
    %c0_11 = arith.constant 0 : index
    %31 = vector.load %arg4[%c0_10, %c0_11] : memref<128x384xbf16, #tpu.memory_space<vmem>>, vector<128x384xbf16>
    %cst_12 = arith.constant dense<0.000000e+00> : vector<16x384xf32>
    %32 = tpu.matmul %30, %31, %cst_12 {dimension_numbers = #tpu.dot_dimension_numbers<[1], [0], [0], [1], [0, 0, 1, 1], [], []>} : vector<16x128xbf16>, vector<128x384xbf16>, vector<16x384xf32> -> vector<16x384xf32>
    %c0_13 = arith.constant 0 : index
    %c0_14 = arith.constant 0 : index
    %33 = vector.load %arg5[%c0_13, %c0_14] : memref<1x384xf32, #tpu.memory_space<vmem>>, vector<1x384xf32>
    %34 = vector.shape_cast %33 : vector<1x384xf32> to vector<384xf32>
    %35 = vector.shape_cast %34 : vector<384xf32> to vector<1x384xf32>
    %36 = vector.broadcast %35 : vector<1x384xf32> to vector<16x384xf32>
    %37 = arith.addf %32, %36 : vector<16x384xf32>
    %38 = vector.extract_strided_slice %37 {offsets = [0, 0], sizes = [16, 128], strides = [1, 1]} : vector<16x384xf32> to vector<16x128xf32>
    %39 = vector.extract_strided_slice %37 {offsets = [0, 128], sizes = [16, 128], strides = [1, 1]} : vector<16x384xf32> to vector<16x128xf32>
    %40 = vector.extract_strided_slice %37 {offsets = [0, 256], sizes = [16, 128], strides = [1, 1]} : vector<16x384xf32> to vector<16x128xf32>
    %41 = tpu.iota {dimensions = array<i32: 0>} : vector<16x16xi32>
    %42 = tpu.iota {dimensions = array<i32: 1>} : vector<16x16xi32>
    %43 = arith.cmpi sge, %41, %42 : vector<16x16xi32>
    %44 = vector.extract_strided_slice %38 {offsets = [0, 0], sizes = [16, 32], strides = [1, 1]} : vector<16x128xf32> to vector<16x32xf32>
    %45 = arith.truncf %44 : vector<16x32xf32> to vector<16x32xbf16>
    %46 = vector.extract_strided_slice %39 {offsets = [0, 0], sizes = [16, 32], strides = [1, 1]} : vector<16x128xf32> to vector<16x32xf32>
    %47 = arith.truncf %46 : vector<16x32xf32> to vector<16x32xbf16>
    %48 = vector.extract_strided_slice %40 {offsets = [0, 0], sizes = [16, 32], strides = [1, 1]} : vector<16x128xf32> to vector<16x32xf32>
    %49 = arith.truncf %48 : vector<16x32xf32> to vector<16x32xbf16>
    %cst_15 = arith.constant dense<0.000000e+00> : vector<16x16xf32>
    %50 = tpu.matmul %45, %47, %cst_15 {dimension_numbers = #tpu.dot_dimension_numbers<[1], [1], [0], [0], [0, 0, 1, 0], [], []>} : vector<16x32xbf16>, vector<16x32xbf16>, vector<16x16xf32> -> vector<16x16xf32>
    %cst_16 = arith.constant 0.176776692 : f32
    %51 = vector.broadcast %cst_16 : f32 to vector<16x16xf32>
    %52 = arith.mulf %50, %51 : vector<16x16xf32>
    %cst_17 = arith.constant -1.000000e+09 : f32
    %53 = vector.broadcast %cst_17 : f32 to vector<16x16xf32>
    %54 = arith.select %43, %52, %53 : vector<16x16xi1>, vector<16x16xf32>
    %cst_18 = arith.constant dense<0xFF800000> : vector<16xf32>
    %55 = vector.multi_reduction <maximumf>, %54, %cst_18 [1] : vector<16x16xf32> to vector<16xf32>
    %56 = vector.shape_cast %55 : vector<16xf32> to vector<16x1xf32>
    %57 = vector.broadcast %56 : vector<16x1xf32> to vector<16x16xf32>
    %58 = arith.subf %54, %57 : vector<16x16xf32>
    %59 = math.exp %58 : vector<16x16xf32>
    %cst_19 = arith.constant dense<0.000000e+00> : vector<16xf32>
    %60 = vector.multi_reduction <add>, %59, %cst_19 [1] : vector<16x16xf32> to vector<16xf32>
    %61 = vector.shape_cast %60 : vector<16xf32> to vector<16x1xf32>
    %62 = tpu.reciprocal %61 {approx = true} : vector<16x1xf32> -> vector<16x1xf32>
    %63 = vector.broadcast %62 : vector<16x1xf32> to vector<16x16xf32>
    %64 = arith.mulf %59, %63 : vector<16x16xf32>
    %65 = arith.truncf %64 : vector<16x16xf32> to vector<16x16xbf16>
    %cst_20 = arith.constant dense<0.000000e+00> : vector<16x32xf32>
    %66 = tpu.matmul %65, %49, %cst_20 {dimension_numbers = #tpu.dot_dimension_numbers<[1], [0], [0], [1], [0, 0, 1, 1], [], []>} : vector<16x16xbf16>, vector<16x32xbf16>, vector<16x32xf32> -> vector<16x32xf32>
    %c0_21 = arith.constant 0 : index
    %c0_22 = arith.constant 0 : index
    %67 = vector.load %arg15[%c0_21, %c0_22] : memref<16x128xf32, #tpu.memory_space<vmem>>, vector<16x32xf32>
    tpu.vector_store %arg15[%c0_21, %c0_22], %66 {strides = array<i32>} : memref<16x128xf32, #tpu.memory_space<vmem>>, vector<16x32xf32>,
    %68 = vector.extract_strided_slice %38 {offsets = [0, 32], sizes = [16, 32], strides = [1, 1]} : vector<16x128xf32> to vector<16x32xf32>
    %69 = arith.truncf %68 : vector<16x32xf32> to vector<16x32xbf16>
    %70 = vector.extract_strided_slice %39 {offsets = [0, 32], sizes = [16, 32], strides = [1, 1]} : vector<16x128xf32> to vector<16x32xf32>
    %71 = arith.truncf %70 : vector<16x32xf32> to vector<16x32xbf16>
    %72 = vector.extract_strided_slice %40 {offsets = [0, 32], sizes = [16, 32], strides = [1, 1]} : vector<16x128xf32> to vector<16x32xf32>
    %73 = arith.truncf %72 : vector<16x32xf32> to vector<16x32xbf16>
    %cst_23 = arith.constant dense<0.000000e+00> : vector<16x16xf32>
    %74 = tpu.matmul %69, %71, %cst_23 {dimension_numbers = #tpu.dot_dimension_numbers<[1], [1], [0], [0], [0, 0, 1, 0], [], []>} : vector<16x32xbf16>, vector<16x32xbf16>, vector<16x16xf32> -> vector<16x16xf32>
    %cst_24 = arith.constant 0.176776692 : f32
    %75 = vector.broadcast %cst_24 : f32 to vector<16x16xf32>
    %76 = arith.mulf %74, %75 : vector<16x16xf32>
    %cst_25 = arith.constant -1.000000e+09 : f32
    %77 = vector.broadcast %cst_25 : f32 to vector<16x16xf32>
    %78 = arith.select %43, %76, %77 : vector<16x16xi1>, vector<16x16xf32>
    %cst_26 = arith.constant dense<0xFF800000> : vector<16xf32>
    %79 = vector.multi_reduction <maximumf>, %78, %cst_26 [1] : vector<16x16xf32> to vector<16xf32>
    %80 = vector.shape_cast %79 : vector<16xf32> to vector<16x1xf32>
    %81 = vector.broadcast %80 : vector<16x1xf32> to vector<16x16xf32>
    %82 = arith.subf %78, %81 : vector<16x16xf32>
    %83 = math.exp %82 : vector<16x16xf32>
    %cst_27 = arith.constant dense<0.000000e+00> : vector<16xf32>
    %84 = vector.multi_reduction <add>, %83, %cst_27 [1] : vector<16x16xf32> to vector<16xf32>
    %85 = vector.shape_cast %84 : vector<16xf32> to vector<16x1xf32>
    %86 = tpu.reciprocal %85 {approx = true} : vector<16x1xf32> -> vector<16x1xf32>
    %87 = vector.broadcast %86 : vector<16x1xf32> to vector<16x16xf32>
    %88 = arith.mulf %83, %87 : vector<16x16xf32>
    %89 = arith.truncf %88 : vector<16x16xf32> to vector<16x16xbf16>
    %cst_28 = arith.constant dense<0.000000e+00> : vector<16x32xf32>
    %90 = tpu.matmul %89, %73, %cst_28 {dimension_numbers = #tpu.dot_dimension_numbers<[1], [0], [0], [1], [0, 0, 1, 1], [], []>} : vector<16x16xbf16>, vector<16x32xbf16>, vector<16x32xf32> -> vector<16x32xf32>
    %c0_29 = arith.constant 0 : index
    %c32 = arith.constant 32 : index
    %91 = vector.load %arg15[%c0_29, %c32] : memref<16x128xf32, #tpu.memory_space<vmem>>, vector<16x32xf32>
    tpu.vector_store %arg15[%c0_29, %c32], %90 {strides = array<i32>} : memref<16x128xf32, #tpu.memory_space<vmem>>, vector<16x32xf32>,
    %92 = vector.extract_strided_slice %38 {offsets = [0, 64], sizes = [16, 32], strides = [1, 1]} : vector<16x128xf32> to vector<16x32xf32>
    %93 = arith.truncf %92 : vector<16x32xf32> to vector<16x32xbf16>
    %94 = vector.extract_strided_slice %39 {offsets = [0, 64], sizes = [16, 32], strides = [1, 1]} : vector<16x128xf32> to vector<16x32xf32>
    %95 = arith.truncf %94 : vector<16x32xf32> to vector<16x32xbf16>
    %96 = vector.extract_strided_slice %40 {offsets = [0, 64], sizes = [16, 32], strides = [1, 1]} : vector<16x128xf32> to vector<16x32xf32>
    %97 = arith.truncf %96 : vector<16x32xf32> to vector<16x32xbf16>
    %cst_30 = arith.constant dense<0.000000e+00> : vector<16x16xf32>
    %98 = tpu.matmul %93, %95, %cst_30 {dimension_numbers = #tpu.dot_dimension_numbers<[1], [1], [0], [0], [0, 0, 1, 0], [], []>} : vector<16x32xbf16>, vector<16x32xbf16>, vector<16x16xf32> -> vector<16x16xf32>
    %cst_31 = arith.constant 0.176776692 : f32
    %99 = vector.broadcast %cst_31 : f32 to vector<16x16xf32>
    %100 = arith.mulf %98, %99 : vector<16x16xf32>
    %cst_32 = arith.constant -1.000000e+09 : f32
    %101 = vector.broadcast %cst_32 : f32 to vector<16x16xf32>
    %102 = arith.select %43, %100, %101 : vector<16x16xi1>, vector<16x16xf32>
    %cst_33 = arith.constant dense<0xFF800000> : vector<16xf32>
    %103 = vector.multi_reduction <maximumf>, %102, %cst_33 [1] : vector<16x16xf32> to vector<16xf32>
    %104 = vector.shape_cast %103 : vector<16xf32> to vector<16x1xf32>
    %105 = vector.broadcast %104 : vector<16x1xf32> to vector<16x16xf32>
    %106 = arith.subf %102, %105 : vector<16x16xf32>
    %107 = math.exp %106 : vector<16x16xf32>
    %cst_34 = arith.constant dense<0.000000e+00> : vector<16xf32>
    %108 = vector.multi_reduction <add>, %107, %cst_34 [1] : vector<16x16xf32> to vector<16xf32>
    %109 = vector.shape_cast %108 : vector<16xf32> to vector<16x1xf32>
    %110 = tpu.reciprocal %109 {approx = true} : vector<16x1xf32> -> vector<16x1xf32>
    %111 = vector.broadcast %110 : vector<16x1xf32> to vector<16x16xf32>
    %112 = arith.mulf %107, %111 : vector<16x16xf32>
    %113 = arith.truncf %112 : vector<16x16xf32> to vector<16x16xbf16>
    %cst_35 = arith.constant dense<0.000000e+00> : vector<16x32xf32>
    %114 = tpu.matmul %113, %97, %cst_35 {dimension_numbers = #tpu.dot_dimension_numbers<[1], [0], [0], [1], [0, 0, 1, 1], [], []>} : vector<16x16xbf16>, vector<16x32xbf16>, vector<16x32xf32> -> vector<16x32xf32>
    %c0_36 = arith.constant 0 : index
    %c64 = arith.constant 64 : index
    %115 = vector.load %arg15[%c0_36, %c64] : memref<16x128xf32, #tpu.memory_space<vmem>>, vector<16x32xf32>
    tpu.vector_store %arg15[%c0_36, %c64], %114 {strides = array<i32>} : memref<16x128xf32, #tpu.memory_space<vmem>>, vector<16x32xf32>,
    %116 = vector.extract_strided_slice %38 {offsets = [0, 96], sizes = [16, 32], strides = [1, 1]} : vector<16x128xf32> to vector<16x32xf32>
    %117 = arith.truncf %116 : vector<16x32xf32> to vector<16x32xbf16>
    %118 = vector.extract_strided_slice %39 {offsets = [0, 96], sizes = [16, 32], strides = [1, 1]} : vector<16x128xf32> to vector<16x32xf32>
    %119 = arith.truncf %118 : vector<16x32xf32> to vector<16x32xbf16>
    %120 = vector.extract_strided_slice %40 {offsets = [0, 96], sizes = [16, 32], strides = [1, 1]} : vector<16x128xf32> to vector<16x32xf32>
    %121 = arith.truncf %120 : vector<16x32xf32> to vector<16x32xbf16>
    %cst_37 = arith.constant dense<0.000000e+00> : vector<16x16xf32>
    %122 = tpu.matmul %117, %119, %cst_37 {dimension_numbers = #tpu.dot_dimension_numbers<[1], [1], [0], [0], [0, 0, 1, 0], [], []>} : vector<16x32xbf16>, vector<16x32xbf16>, vector<16x16xf32> -> vector<16x16xf32>
    %cst_38 = arith.constant 0.176776692 : f32
    %123 = vector.broadcast %cst_38 : f32 to vector<16x16xf32>
    %124 = arith.mulf %122, %123 : vector<16x16xf32>
    %cst_39 = arith.constant -1.000000e+09 : f32
    %125 = vector.broadcast %cst_39 : f32 to vector<16x16xf32>
    %126 = arith.select %43, %124, %125 : vector<16x16xi1>, vector<16x16xf32>
    %cst_40 = arith.constant dense<0xFF800000> : vector<16xf32>
    %127 = vector.multi_reduction <maximumf>, %126, %cst_40 [1] : vector<16x16xf32> to vector<16xf32>
    %128 = vector.shape_cast %127 : vector<16xf32> to vector<16x1xf32>
    %129 = vector.broadcast %128 : vector<16x1xf32> to vector<16x16xf32>
    %130 = arith.subf %126, %129 : vector<16x16xf32>
    %131 = math.exp %130 : vector<16x16xf32>
    %cst_41 = arith.constant dense<0.000000e+00> : vector<16xf32>
    %132 = vector.multi_reduction <add>, %131, %cst_41 [1] : vector<16x16xf32> to vector<16xf32>
    %133 = vector.shape_cast %132 : vector<16xf32> to vector<16x1xf32>
    %134 = tpu.reciprocal %133 {approx = true} : vector<16x1xf32> -> vector<16x1xf32>
    %135 = vector.broadcast %134 : vector<16x1xf32> to vector<16x16xf32>
    %136 = arith.mulf %131, %135 : vector<16x16xf32>
    %137 = arith.truncf %136 : vector<16x16xf32> to vector<16x16xbf16>
    %cst_42 = arith.constant dense<0.000000e+00> : vector<16x32xf32>
    %138 = tpu.matmul %137, %121, %cst_42 {dimension_numbers = #tpu.dot_dimension_numbers<[1], [0], [0], [1], [0, 0, 1, 1], [], []>} : vector<16x16xbf16>, vector<16x32xbf16>, vector<16x32xf32> -> vector<16x32xf32>
    %c0_43 = arith.constant 0 : index
    %c96 = arith.constant 96 : index
    %139 = vector.load %arg15[%c0_43, %c96] : memref<16x128xf32, #tpu.memory_space<vmem>>, vector<16x32xf32>
    tpu.vector_store %arg15[%c0_43, %c96], %138 {strides = array<i32>} : memref<16x128xf32, #tpu.memory_space<vmem>>, vector<16x32xf32>,
    %c0_44 = arith.constant 0 : index
    %c0_45 = arith.constant 0 : index
    %140 = vector.load %arg15[%c0_44, %c0_45] : memref<16x128xf32, #tpu.memory_space<vmem>>, vector<16x128xf32>
    %141 = arith.truncf %140 : vector<16x128xf32> to vector<16x128xbf16>
    %c0_46 = arith.constant 0 : index
    %c0_47 = arith.constant 0 : index
    %142 = vector.load %arg6[%c0_46, %c0_47] : memref<128x128xbf16, #tpu.memory_space<vmem>>, vector<128x128xbf16>
    %cst_48 = arith.constant dense<0.000000e+00> : vector<16x128xf32>
    %143 = tpu.matmul %141, %142, %cst_48 {dimension_numbers = #tpu.dot_dimension_numbers<[1], [0], [0], [1], [0, 0, 1, 1], [], []>} : vector<16x128xbf16>, vector<128x128xbf16>, vector<16x128xf32> -> vector<16x128xf32>
    %c0_49 = arith.constant 0 : index
    %c0_50 = arith.constant 0 : index
    %144 = vector.load %arg7[%c0_49, %c0_50] : memref<1x128xf32, #tpu.memory_space<vmem>>, vector<1x128xf32>
    %145 = vector.shape_cast %144 : vector<1x128xf32> to vector<128xf32>
    %146 = vector.shape_cast %145 : vector<128xf32> to vector<1x128xf32>
    %147 = vector.broadcast %146 : vector<1x128xf32> to vector<16x128xf32>
    %148 = arith.addf %143, %147 : vector<16x128xf32>
    %149 = arith.addf %1, %148 : vector<16x128xf32>
    %c0_51 = arith.constant 0 : index
    %c0_52 = arith.constant 0 : index
    %150 = vector.load %arg8[%c0_51, %c0_52] : memref<1x128xf32, #tpu.memory_space<vmem>>, vector<1x128xf32>
    %151 = vector.shape_cast %150 : vector<1x128xf32> to vector<128xf32>
    %c0_53 = arith.constant 0 : index
    %c0_54 = arith.constant 0 : index
    %152 = vector.load %arg9[%c0_53, %c0_54] : memref<1x128xf32, #tpu.memory_space<vmem>>, vector<1x128xf32>
    %153 = vector.shape_cast %152 : vector<1x128xf32> to vector<128xf32>
    %cst_55 = arith.constant dense<0.000000e+00> : vector<16xf32>
    %154 = vector.multi_reduction <add>, %149, %cst_55 [1] : vector<16x128xf32> to vector<16xf32>
    %155 = vector.shape_cast %154 : vector<16xf32> to vector<16x1xf32>
    %cst_56 = arith.constant 1.280000e+02 : f32
    %156 = vector.broadcast %cst_56 : f32 to vector<16x1xf32>
    %157 = arith.divf %155, %156 : vector<16x1xf32>
    %158 = vector.broadcast %157 : vector<16x1xf32> to vector<16x128xf32>
    %159 = arith.subf %149, %158 : vector<16x128xf32>
    %160 = arith.mulf %159, %159 : vector<16x128xf32>
    %cst_57 = arith.constant dense<0.000000e+00> : vector<16xf32>
    %161 = vector.multi_reduction <add>, %160, %cst_57 [1] : vector<16x128xf32> to vector<16xf32>
    %162 = vector.shape_cast %161 : vector<16xf32> to vector<16x1xf32>
    %cst_58 = arith.constant 1.280000e+02 : f32
    %163 = vector.broadcast %cst_58 : f32 to vector<16x1xf32>
    %164 = arith.divf %162, %163 : vector<16x1xf32>
    %165 = vector.broadcast %157 : vector<16x1xf32> to vector<16x128xf32>
    %166 = arith.subf %149, %165 : vector<16x128xf32>
    %cst_59 = arith.constant 9.99999974E-6 : f32
    %167 = vector.broadcast %cst_59 : f32 to vector<16x1xf32>
    %168 = arith.addf %164, %167 : vector<16x1xf32>
    %169 = math.rsqrt %168 : vector<16x1xf32>
    %170 = vector.broadcast %169 : vector<16x1xf32> to vector<16x128xf32>
    %171 = arith.mulf %166, %170 : vector<16x128xf32>
    %172 = vector.shape_cast %151 : vector<128xf32> to vector<1x128xf32>
    %173 = vector.broadcast %172 : vector<1x128xf32> to vector<16x128xf32>
    %174 = arith.mulf %171, %173 : vector<16x128xf32>
    %175 = vector.shape_cast %153 : vector<128xf32> to vector<1x128xf32>
    %176 = vector.broadcast %175 : vector<1x128xf32> to vector<16x128xf32>
    %177 = arith.addf %174, %176 : vector<16x128xf32>
    %178 = arith.truncf %177 : vector<16x128xf32> to vector<16x128xbf16>
    %c0_60 = arith.constant 0 : index
    %c0_61 = arith.constant 0 : index
    %179 = vector.load %arg10[%c0_60, %c0_61] : memref<128x512xbf16, #tpu.memory_space<vmem>>, vector<128x512xbf16>
    %cst_62 = arith.constant dense<0.000000e+00> : vector<16x512xf32>
    %180 = tpu.matmul %178, %179, %cst_62 {dimension_numbers = #tpu.dot_dimension_numbers<[1], [0], [0], [1], [0, 0, 1, 1], [], []>} : vector<16x128xbf16>, vector<128x512xbf16>, vector<16x512xf32> -> vector<16x512xf32>
    %c0_63 = arith.constant 0 : index
    %c0_64 = arith.constant 0 : index
    %181 = vector.load %arg11[%c0_63, %c0_64] : memref<1x512xf32, #tpu.memory_space<vmem>>, vector<1x512xf32>
    %182 = vector.shape_cast %181 : vector<1x512xf32> to vector<512xf32>
    %183 = vector.shape_cast %182 : vector<512xf32> to vector<1x512xf32>
    %184 = vector.broadcast %183 : vector<1x512xf32> to vector<16x512xf32>
    %185 = arith.addf %180, %184 : vector<16x512xf32>
    %cst_65 = arith.constant 5.000000e-01 : f32
    %186 = vector.broadcast %cst_65 : f32 to vector<16x512xf32>
    %187 = arith.mulf %186, %185 : vector<16x512xf32>
    %188 = arith.mulf %185, %185 : vector<16x512xf32>
    %189 = arith.mulf %185, %188 : vector<16x512xf32>
    %cst_66 = arith.constant 4.471500e-02 : f32
    %190 = vector.broadcast %cst_66 : f32 to vector<16x512xf32>
    %191 = arith.mulf %190, %189 : vector<16x512xf32>
    %192 = arith.addf %185, %191 : vector<16x512xf32>
    %cst_67 = arith.constant 0.797884583 : f32
    %193 = vector.broadcast %cst_67 : f32 to vector<16x512xf32>
    %194 = arith.mulf %193, %192 : vector<16x512xf32>
    %195 = math.tanh %194 : vector<16x512xf32>
    %cst_68 = arith.constant 1.000000e+00 : f32
    %196 = vector.broadcast %cst_68 : f32 to vector<16x512xf32>
    %197 = arith.addf %196, %195 : vector<16x512xf32>
    %198 = arith.mulf %187, %197 : vector<16x512xf32>
    %199 = arith.truncf %198 : vector<16x512xf32> to vector<16x512xbf16>
    %c0_69 = arith.constant 0 : index
    %c0_70 = arith.constant 0 : index
    %200 = vector.load %arg12[%c0_69, %c0_70] : memref<512x128xbf16, #tpu.memory_space<vmem>>, vector<512x128xbf16>
    %cst_71 = arith.constant dense<0.000000e+00> : vector<16x128xf32>
    %201 = tpu.matmul %199, %200, %cst_71 {dimension_numbers = #tpu.dot_dimension_numbers<[1], [0], [0], [1], [0, 0, 1, 1], [], []>} : vector<16x512xbf16>, vector<512x128xbf16>, vector<16x128xf32> -> vector<16x128xf32>
    %c0_72 = arith.constant 0 : index
    %c0_73 = arith.constant 0 : index
    %202 = vector.load %arg13[%c0_72, %c0_73] : memref<1x128xf32, #tpu.memory_space<vmem>>, vector<1x128xf32>
    %203 = vector.shape_cast %202 : vector<1x128xf32> to vector<128xf32>
    %204 = vector.shape_cast %203 : vector<128xf32> to vector<1x128xf32>
    %205 = vector.broadcast %204 : vector<1x128xf32> to vector<16x128xf32>
    %206 = arith.addf %201, %205 : vector<16x128xf32>
    %207 = arith.addf %149, %206 : vector<16x128xf32>
    %c0_74 = arith.constant 0 : index
    %c0_75 = arith.constant 0 : index
    %c0_76 = arith.constant 0 : index
    %208 = vector.load %arg14[%c0_74, %c0_75, %c0_76] : memref<1x16x128xf32, #tpu.memory_space<vmem>>, vector<1x16x128xf32>
    %209 = vector.shape_cast %208 : vector<1x16x128xf32> to vector<16x128xf32>
    %210 = vector.shape_cast %207 : vector<16x128xf32> to vector<1x16x128xf32>
    tpu.vector_store %arg14[%c0_74, %c0_75, %c0_76], %210 {strides = array<i32>} : memref<1x16x128xf32, #tpu.memory_space<vmem>>, vector<1x16x128xf32>,
    return
  }
  func.func @transform_0(%arg0: i32) -> (i32, i32, i32) {
    %c0_i32 = arith.constant 0 : i32
    %c0_i32_0 = arith.constant 0 : i32
    %c0_i32_1 = arith.constant 0 : i32
    return %arg0, %c0_i32, %c0_i32_0 : i32, i32, i32
  }
  func.func @transform_1(%arg0: i32) -> (i32, i32) {
    %c0_i32 = arith.constant 0 : i32
    %c0_i32_0 = arith.constant 0 : i32
    %c0_i32_1 = arith.constant 0 : i32
    return %c0_i32, %c0_i32_0 : i32, i32
  }
  func.func @transform_2(%arg0: i32) -> (i32, i32) {
    %c0_i32 = arith.constant 0 : i32
    %c0_i32_0 = arith.constant 0 : i32
    %c0_i32_1 = arith.constant 0 : i32
    return %c0_i32, %c0_i32_0 : i32, i32
  }
  func.func @transform_3(%arg0: i32) -> (i32, i32) {
    %c0_i32 = arith.constant 0 : i32
    %c0_i32_0 = arith.constant 0 : i32
    %c0_i32_1 = arith.constant 0 : i32
    return %c0_i32, %c0_i32_0 : i32, i32
  }
  func.func @transform_4(%arg0: i32) -> (i32, i32) {
    %c0_i32 = arith.constant 0 : i32
    %c0_i32_0 = arith.constant 0 : i32
    %c0_i32_1 = arith.constant 0 : i32
    return %c0_i32, %c0_i32_0 : i32, i32
  }
  func.func @transform_5(%arg0: i32) -> (i32, i32) {
    %c0_i32 = arith.constant 0 : i32
    %c0_i32_0 = arith.constant 0 : i32
    %c0_i32_1 = arith.constant 0 : i32
    return %c0_i32, %c0_i32_0 : i32, i32
  }
  func.func @transform_6(%arg0: i32) -> (i32, i32) {
    %c0_i32 = arith.constant 0 : i32
    %c0_i32_0 = arith.constant 0 : i32
    %c0_i32_1 = arith.constant 0 : i32
    return %c0_i32, %c0_i32_0 : i32, i32
  }
  func.func @transform_7(%arg0: i32) -> (i32, i32) {
    %c0_i32 = arith.constant 0 : i32
    %c0_i32_0 = arith.constant 0 : i32
    %c0_i32_1 = arith.constant 0 : i32
    return %c0_i32, %c0_i32_0 : i32, i32
  }
  func.func @transform_8(%arg0: i32) -> (i32, i32) {
    %c0_i32 = arith.constant 0 : i32
    %c0_i32_0 = arith.constant 0 : i32
    %c0_i32_1 = arith.constant 0 : i32
    return %c0_i32, %c0_i32_0 : i32, i32
  }
  func.func @transform_9(%arg0: i32) -> (i32, i32) {
    %c0_i32 = arith.constant 0 : i32
    %c0_i32_0 = arith.constant 0 : i32
    %c0_i32_1 = arith.constant 0 : i32
    return %c0_i32, %c0_i32_0 : i32, i32
  }
  func.func @transform_10(%arg0: i32) -> (i32, i32) {
    %c0_i32 = arith.constant 0 : i32
    %c0_i32_0 = arith.constant 0 : i32
    %c0_i32_1 = arith.constant 0 : i32
    return %c0_i32, %c0_i32_0 : i32, i32
  }
  func.func @transform_11(%arg0: i32) -> (i32, i32) {
    %c0_i32 = arith.constant 0 : i32
    %c0_i32_0 = arith.constant 0 : i32
    %c0_i32_1 = arith.constant 0 : i32
    return %c0_i32, %c0_i32_0 : i32, i32
  }
  func.func @transform_12(%arg0: i32) -> (i32, i32) {
    %c0_i32 = arith.constant 0 : i32
    %c0_i32_0 = arith.constant 0 : i32
    %c0_i32_1 = arith.constant 0 : i32
    return %c0_i32, %c0_i32_0 : i32, i32
  }
  func.func @transform_13(%arg0: i32) -> (i32, i32, i32) {
    %c0_i32 = arith.constant 0 : i32
    %c0_i32_0 = arith.constant 0 : i32
    %c0_i32_1 = arith.constant 0 : i32
    return %arg0, %c0_i32, %c0_i32_0 : i32, i32, i32
  }
}

</mosaic_0001>

<llo_original>
// kernel: tpu_custom_call.1
$region0: #{tpu_custom_call.1}
  #allocation0 [shape = 'u32[]', space=smem, size = 0x4, offset = 0x4, fixed_abs, tag = 'smem constant byte address 0x4 - core index']
  #allocation1 [shape = 'u32[144,128]{1,0:T(1,128)}', space=vmem, size = 0x12000, scoped, tag = 'internal scratch']
  #allocation2 [shape = 'f32[16,128]{1,0:T(8,128)}', space=vmem, size = 0x2000, scoped, tag = 'scratch operand']
  %s0 = inlined_call_operand.hbm [shape: f32[2,16,128], index: 0, kind: input, shape index: {}]
  %s1 = inlined_call_operand.hbm [shape: f32[1,128], index: 1, kind: input, shape index: {}]
  %s2 = inlined_call_operand.hbm [shape: f32[1,128], index: 2, kind: input, shape index: {}]
  %s3 = inlined_call_operand.hbm [shape: bf16[128,384], index: 3, kind: input, shape index: {}]
  %s4 = inlined_call_operand.vmem [shape: f32[1,384], index: 4, kind: input, shape index: {}]
  %s5 = inlined_call_operand.hbm [shape: bf16[128,128], index: 5, kind: input, shape index: {}]
  %s6 = inlined_call_operand.vmem [shape: f32[1,128], index: 6, kind: input, shape index: {}]
  %s7 = inlined_call_operand.vmem [shape: f32[1,128], index: 7, kind: input, shape index: {}]
  %s8 = inlined_call_operand.vmem [shape: f32[1,128], index: 8, kind: input, shape index: {}]
  %s9 = inlined_call_operand.hbm [shape: bf16[128,512], index: 9, kind: input, shape index: {}]
  %s10 = inlined_call_operand.vmem [shape: f32[1,512], index: 10, kind: input, shape index: {}]
  %s11 = inlined_call_operand.hbm [shape: bf16[512,128], index: 11, kind: input, shape index: {}]
  %s12 = inlined_call_operand.vmem [shape: f32[1,128], index: 12, kind: input, shape index: {}]
  %s13 = inlined_call_operand.hbm [shape: f32[2,16,128], index: 13, kind: output, shape index: {}]
  %s14 = sld [smem:[#allocation0]]
  $region113: #{tpu_custom_call.1} parent=0
    _
  %s16 = ssub.s32 1, %s14
  %s17 = scalar_select 0, %s16, %s14
  $region1: #{tpu_custom_call.1} parent=0
    #allocation3 [shape = 'u8[16384]{0}', space=vmem, size = 0x4000, scoped, tag = 'input window, operand 0']
    #allocation4 [shape = 's32[2]{0}', space=sflag, size = 0x8, scoped, tag = 'scoped memory for tpu_custom_call.1']
    #allocation5 [shape = 's32[2]{0}', space=sflag, size = 0x8, scoped, tag = 'scoped memory for tpu_custom_call.1']
    #allocation6 [shape = 'u8[512]{0}', space=vmem, size = 0x400, scoped, tag = 'input window, operand 1, single buffered']
    #allocation7 [shape = 's32[1]{0}', space=sflag, size = 0x4, scoped, tag = 'scoped memory for tpu_custom_call.1']
    #allocation8 [shape = 'u8[512]{0}', space=vmem, size = 0x400, scoped, tag = 'input window, operand 2, single buffered']
    #allocation9 [shape = 'u8[98304]{0}', space=vmem, size = 0x18000, scoped, tag = 'input window, operand 3, single buffered']
    #allocation10 [shape = 's32[1]{0}', space=sflag, size = 0x4, scoped, tag = 'scoped memory for tpu_custom_call.1']
    #allocation11 [shape = 'u8[32768]{0}', space=vmem, size = 0x8000, scoped, tag = 'input window, operand 5, single buffered']
    #allocation12 [shape = 'u8[131072]{0}', space=vmem, size = 0x20000, scoped, tag = 'input window, operand 9, single buffered']
    #allocation13 [shape = 's32[1]{0}', space=sflag, size = 0x4, scoped, tag = 'scoped memory for tpu_custom_call.1']
    #allocation14 [shape = 'u8[131072]{0}', space=vmem, size = 0x20000, scoped, tag = 'input window, operand 11, single buffered']
    #allocation15 [shape = 'u8[16384]{0}', space=vmem, size = 0x4000, scoped, tag = 'output window, operand 0']
    %18 = vsyncpa [#allocation4], 0
    %s19 = scalar_lea.sflag [#allocation4], 1
    %20 = vsyncpa %s19, 0
    %21 = vsyncpa [#allocation7], 0
    %22 = vsyncpa [#allocation10], 0
    %23 = vsyncpa [#allocation13], 0
    %24 = vsyncpa [#allocation5], 0
    %s25 = scalar_lea.sflag [#allocation5], 1
    %26 = vsyncpa %s25, 0
    loop: start=0, step=1, limit=4
    $region2: #{tpu_custom_call.1} parent=1 // loop_pre_header
      _
    $region3: #{tpu_custom_call.1} parent=1 // loop_header
      %s28 = sphi 0, %s32
      %p29 = scmp.ge.s32.totalorder %s28, 4
      %s38 = sphi 0, %s40
      %s41 = sphi 0, %s38
      %s42 = sphi 0, %s41
      %s58 = sphi 0, %s42
      %s62 = sphi 0, %s62
      %s64 = sphi 0, %s62
      %s65 = sphi 0, %s64
      %s79 = sphi 0, %s65
      %s83 = sphi 0, %s83
      %s85 = sphi 0, %s83
      %s86 = sphi 0, %s85
      %s100 = sphi 0, %s86
      %s104 = sphi 0, %s104
      %s106 = sphi 0, %s104
      %s107 = sphi 0, %s106
      %s121 = sphi 0, %s107
      %s125 = sphi 0, %s125
      %s127 = sphi 0, %s125
      %s128 = sphi 0, %s127
      %s142 = sphi 0, %s128
      %s146 = sphi 0, %s146
      %s148 = sphi 0, %s146
      %s149 = sphi 0, %s148
      %s163 = sphi 0, %s149
      %s167 = sphi 0, %s167
      %s169 = sphi 0, %s167
      %s170 = sphi 0, %s169
      %s184 = sphi 0, %s170
      %s188 = sphi 0, %s188
      %s190 = sphi 0, %s188
      %s191 = sphi 0, %s190
      %s205 = sphi 0, %s191
      %s209 = sphi 0, %s209
      %s211 = sphi 0, %s209
      %s212 = sphi 0, %s211
      %s226 = sphi 0, %s212
      %s230 = sphi 0, %s230
      %s232 = sphi 0, %s230
      %s233 = sphi 0, %s232
      %s247 = sphi 0, %s233
      %s251 = sphi 0, %s251
      %s253 = sphi 0, %s251
      %s254 = sphi 0, %s253
      %s268 = sphi 0, %s254
      %s272 = sphi 0, %s272
      %s274 = sphi 0, %s272
      %s275 = sphi 0, %s274
      %s289 = sphi 0, %s275
      %s293 = sphi 0, %s293
      %s295 = sphi 0, %s293
      %s296 = sphi 0, %s295
      %s310 = sphi 0, %s296
      %s316 = sphi 0, %s318
      %s319 = sphi 0, %s316
      %s320 = sphi 0, %s319
      %s336 = sphi 0, %s320
    $region4: #{tpu_custom_call.1} parent=1 // loop_header_branch
      %31 = sbr.rel (%p29) target = $region8
    $region5: #{tpu_custom_call.1} parent=1 // loop_body
      %s33 = ssub.s32 %s28, 1
      %s34 = ssub.s32 %s28, 2
      %s35 = sadd.s32 %s28, 1
      %s36 = ssub.s32 %s28, %s35
      %p37 = scmp.eq.s32.totalorder %s36, 0
      %s39 = sadd.s32 %s38, 1
      %s40 = scalar_select %p37, %s38, %s39
      %p43 = pneg %p37
      %p44 = scmp.eq.s32.totalorder %s28, 1
      %p45 = por %p43, %p44
      %p46 = scmp.ne.s32.totalorder %s38, %s41
      %p47 = scmp.eq.s32.totalorder %s28, 0
      %p48 = por %p46, %p47
      %p49 = scmp.ne.s32.totalorder %s38, %s41
      %p50 = scmp.eq.s32.totalorder %s33, 1
      %p51 = por %p49, %p50
      %p52 = scmp.ne.s32.totalorder %s41, %s42
      %p53 = scmp.eq.s32.totalorder %s33, 0
      %p54 = por %p52, %p53
      %p55 = scmp.ne.s32.totalorder %s41, %s42
      %p56 = scmp.eq.s32.totalorder %s34, 1
      %p57 = por %p55, %p56
      %p59 = scmp.ne.s32.totalorder %s42, %s58
      %p60 = scmp.eq.s32.totalorder %s34, 0
      %p61 = por %p59, %p60
      %s63 = sadd.s32 %s62, 1
      %p66 = scmp.eq.s32.totalorder %s28, 1
      %p67 = scmp.ne.s32.totalorder %s62, %s64
      %p68 = scmp.eq.s32.totalorder %s28, 0
      %p69 = por %p67, %p68
      %p70 = scmp.ne.s32.totalorder %s62, %s64
      %p71 = scmp.eq.s32.totalorder %s33, 1
      %p72 = por %p70, %p71
      %p73 = scmp.ne.s32.totalorder %s64, %s65
      %p74 = scmp.eq.s32.totalorder %s33, 0
      %p75 = por %p73, %p74
      %p76 = scmp.ne.s32.totalorder %s64, %s65
      %p77 = scmp.eq.s32.totalorder %s34, 1
      %p78 = por %p76, %p77
      %p80 = scmp.ne.s32.totalorder %s65, %s79
      %p81 = scmp.eq.s32.totalorder %s34, 0
      %p82 = por %p80, %p81
      %s84 = sadd.s32 %s83, 1
      %p87 = scmp.eq.s32.totalorder %s28, 1
      %p88 = scmp.ne.s32.totalorder %s83, %s85
      %p89 = scmp.eq.s32.totalorder %s28, 0
      %p90 = por %p88, %p89
      %p91 = scmp.ne.s32.totalorder %s83, %s85
      %p92 = scmp.eq.s32.totalorder %s33, 1
      %p93 = por %p91, %p92
      %p94 = scmp.ne.s32.totalorder %s85, %s86
      %p95 = scmp.eq.s32.totalorder %s33, 0
      %p96 = por %p94, %p95
      %p97 = scmp.ne.s32.totalorder %s85, %s86
      %p98 = scmp.eq.s32.totalorder %s34, 1
      %p99 = por %p97, %p98
      %p101 = scmp.ne.s32.totalorder %s86, %s100
      %p102 = scmp.eq.s32.totalorder %s34, 0
      %p103 = por %p101, %p102
      %s105 = sadd.s32 %s104, 1
      %p108 = scmp.eq.s32.totalorder %s28, 1
      %p109 = scmp.ne.s32.totalorder %s104, %s106
      %p110 = scmp.eq.s32.totalorder %s28, 0
      %p111 = por %p109, %p110
      %p112 = scmp.ne.s32.totalorder %s104, %s106
      %p113 = scmp.eq.s32.totalorder %s33, 1
      %p114 = por %p112, %p113
      %p115 = scmp.ne.s32.totalorder %s106, %s107
      %p116 = scmp.eq.s32.totalorder %s33, 0
      %p117 = por %p115, %p116
      %p118 = scmp.ne.s32.totalorder %s106, %s107
      %p119 = scmp.eq.s32.totalorder %s34, 1
      %p120 = por %p118, %p119
      %p122 = scmp.ne.s32.totalorder %s107, %s121
      %p123 = scmp.eq.s32.totalorder %s34, 0
      %p124 = por %p122, %p123
      %s126 = sadd.s32 %s125, 1
      %p129 = scmp.eq.s32.totalorder %s28, 1
      %p130 = scmp.ne.s32.totalorder %s125, %s127
      %p131 = scmp.eq.s32.totalorder %s28, 0
      %p132 = por %p130, %p131
      %p133 = scmp.ne.s32.totalorder %s125, %s127
      %p134 = scmp.eq.s32.totalorder %s33, 1
      %p135 = por %p133, %p134
      %p136 = scmp.ne.s32.totalorder %s127, %s128
      %p137 = scmp.eq.s32.totalorder %s33, 0
      %p138 = por %p136, %p137
      %p139 = scmp.ne.s32.totalorder %s127, %s128
      %p140 = scmp.eq.s32.totalorder %s34, 1
      %p141 = por %p139, %p140
      %p143 = scmp.ne.s32.totalorder %s128, %s142
      %p144 = scmp.eq.s32.totalorder %s34, 0
      %p145 = por %p143, %p144
      %s147 = sadd.s32 %s146, 1
      %p150 = scmp.eq.s32.totalorder %s28, 1
      %p151 = scmp.ne.s32.totalorder %s146, %s148
      %p152 = scmp.eq.s32.totalorder %s28, 0
      %p153 = por %p151, %p152
      %p154 = scmp.ne.s32.totalorder %s146, %s148
      %p155 = scmp.eq.s32.totalorder %s33, 1
      %p156 = por %p154, %p155
      %p157 = scmp.ne.s32.totalorder %s148, %s149
      %p158 = scmp.eq.s32.totalorder %s33, 0
      %p159 = por %p157, %p158
      %p160 = scmp.ne.s32.totalorder %s148, %s149
      %p161 = scmp.eq.s32.totalorder %s34, 1
      %p162 = por %p160, %p161
      %p164 = scmp.ne.s32.totalorder %s149, %s163
      %p165 = scmp.eq.s32.totalorder %s34, 0
      %p166 = por %p164, %p165
      %s168 = sadd.s32 %s167, 1
      %p171 = scmp.eq.s32.totalorder %s28, 1
      %p172 = scmp.ne.s32.totalorder %s167, %s169
      %p173 = scmp.eq.s32.totalorder %s28, 0
      %p174 = por %p172, %p173
      %p175 = scmp.ne.s32.totalorder %s167, %s169
      %p176 = scmp.eq.s32.totalorder %s33, 1
      %p177 = por %p175, %p176
      %p178 = scmp.ne.s32.totalorder %s169, %s170
      %p179 = scmp.eq.s32.totalorder %s33, 0
      %p180 = por %p178, %p179
      %p181 = scmp.ne.s32.totalorder %s169, %s170
      %p182 = scmp.eq.s32.totalorder %s34, 1
      %p183 = por %p181, %p182
      %p185 = scmp.ne.s32.totalorder %s170, %s184
      %p186 = scmp.eq.s32.totalorder %s34, 0
      %p187 = por %p185, %p186
      %s189 = sadd.s32 %s188, 1
      %p192 = scmp.eq.s32.totalorder %s28, 1
      %p193 = scmp.ne.s32.totalorder %s188, %s190
      %p194 = scmp.eq.s32.totalorder %s28, 0
      %p195 = por %p193, %p194
      %p196 = scmp.ne.s32.totalorder %s188, %s190
      %p197 = scmp.eq.s32.totalorder %s33, 1
      %p198 = por %p196, %p197
      %p199 = scmp.ne.s32.totalorder %s190, %s191
      %p200 = scmp.eq.s32.totalorder %s33, 0
      %p201 = por %p199, %p200
      %p202 = scmp.ne.s32.totalorder %s190, %s191
      %p203 = scmp.eq.s32.totalorder %s34, 1
      %p204 = por %p202, %p203
      %p206 = scmp.ne.s32.totalorder %s191, %s205
      %p207 = scmp.eq.s32.totalorder %s34, 0
      %p208 = por %p206, %p207
      %s210 = sadd.s32 %s209, 1
      %p213 = scmp.eq.s32.totalorder %s28, 1
      %p214 = scmp.ne.s32.totalorder %s209, %s211
      %p215 = scmp.eq.s32.totalorder %s28, 0
      %p216 = por %p214, %p215
      %p217 = scmp.ne.s32.totalorder %s209, %s211
      %p218 = scmp.eq.s32.totalorder %s33, 1
      %p219 = por %p217, %p218
      %p220 = scmp.ne.s32.totalorder %s211, %s212
      %p221 = scmp.eq.s32.totalorder %s33, 0
      %p222 = por %p220, %p221
      %p223 = scmp.ne.s32.totalorder %s211, %s212
      %p224 = scmp.eq.s32.totalorder %s34, 1
      %p225 = por %p223, %p224
      %p227 = scmp.ne.s32.totalorder %s212, %s226
      %p228 = scmp.eq.s32.totalorder %s34, 0
      %p229 = por %p227, %p228
      %s231 = sadd.s32 %s230, 1
      %p234 = scmp.eq.s32.totalorder %s28, 1
      %p235 = scmp.ne.s32.totalorder %s230, %s232
      %p236 = scmp.eq.s32.totalorder %s28, 0
      %p237 = por %p235, %p236
      %p238 = scmp.ne.s32.totalorder %s230, %s232
      %p239 = scmp.eq.s32.totalorder %s33, 1
      %p240 = por %p238, %p239
      %p241 = scmp.ne.s32.totalorder %s232, %s233
      %p242 = scmp.eq.s32.totalorder %s33, 0
      %p243 = por %p241, %p242
      %p244 = scmp.ne.s32.totalorder %s232, %s233
      %p245 = scmp.eq.s32.totalorder %s34, 1
      %p246 = por %p244, %p245
      %p248 = scmp.ne.s32.totalorder %s233, %s247
      %p249 = scmp.eq.s32.totalorder %s34, 0
      %p250 = por %p248, %p249
      %s252 = sadd.s32 %s251, 1
      %p255 = scmp.eq.s32.totalorder %s28, 1
      %p256 = scmp.ne.s32.totalorder %s251, %s253
      %p257 = scmp.eq.s32.totalorder %s28, 0
      %p258 = por %p256, %p257
      %p259 = scmp.ne.s32.totalorder %s251, %s253
      %p260 = scmp.eq.s32.totalorder %s33, 1
      %p261 = por %p259, %p260
      %p262 = scmp.ne.s32.totalorder %s253, %s254
      %p263 = scmp.eq.s32.totalorder %s33, 0
      %p264 = por %p262, %p263
      %p265 = scmp.ne.s32.totalorder %s253, %s254
      %p266 = scmp.eq.s32.totalorder %s34, 1
      %p267 = por %p265, %p266
      %p269 = scmp.ne.s32.totalorder %s254, %s268
      %p270 = scmp.eq.s32.totalorder %s34, 0
      %p271 = por %p269, %p270
      %s273 = sadd.s32 %s272, 1
      %p276 = scmp.eq.s32.totalorder %s28, 1
      %p277 = scmp.ne.s32.totalorder %s272, %s274
      %p278 = scmp.eq.s32.totalorder %s28, 0
      %p279 = por %p277, %p278
      %p280 = scmp.ne.s32.totalorder %s272, %s274
      %p281 = scmp.eq.s32.totalorder %s33, 1
      %p282 = por %p280, %p281
      %p283 = scmp.ne.s32.totalorder %s274, %s275
      %p284 = scmp.eq.s32.totalorder %s33, 0
      %p285 = por %p283, %p284
      %p286 = scmp.ne.s32.totalorder %s274, %s275
      %p287 = scmp.eq.s32.totalorder %s34, 1
      %p288 = por %p286, %p287
      %p290 = scmp.ne.s32.totalorder %s275, %s289
      %p291 = scmp.eq.s32.totalorder %s34, 0
      %p292 = por %p290, %p291
      %s294 = sadd.s32 %s293, 1
      %p297 = scmp.eq.s32.totalorder %s28, 1
      %p298 = scmp.ne.s32.totalorder %s293, %s295
      %p299 = scmp.eq.s32.totalorder %s28, 0
      %p300 = por %p298, %p299
      %p301 = scmp.ne.s32.totalorder %s293, %s295
      %p302 = scmp.eq.s32.totalorder %s33, 1
      %p303 = por %p301, %p302
      %p304 = scmp.ne.s32.totalorder %s295, %s296
      %p305 = scmp.eq.s32.totalorder %s33, 0
      %p306 = por %p304, %p305
      %p307 = scmp.ne.s32.totalorder %s295, %s296
      %p308 = scmp.eq.s32.totalorder %s34, 1
      %p309 = por %p307, %p308
      %p311 = scmp.ne.s32.totalorder %s296, %s310
      %p312 = scmp.eq.s32.totalorder %s34, 0
      %p313 = por %p311, %p312
      %s314 = ssub.s32 %s28, %s35
      %p315 = scmp.eq.s32.totalorder %s314, 0
      %s317 = sadd.s32 %s316, 1
      %s318 = scalar_select %p315, %s316, %s317
      %p321 = pneg %p315
      %p322 = scmp.eq.s32.totalorder %s28, 1
      %p323 = por %p321, %p322
      %p324 = scmp.ne.s32.totalorder %s316, %s319
      %p325 = scmp.eq.s32.totalorder %s28, 0
      %p326 = por %p324, %p325
      %p327 = scmp.ne.s32.totalorder %s316, %s319
      %p328 = scmp.eq.s32.totalorder %s33, 1
      %p329 = por %p327, %p328
      %p330 = scmp.ne.s32.totalorder %s319, %s320
      %p331 = scmp.eq.s32.totalorder %s33, 0
      %p332 = por %p330, %p331
      %p333 = scmp.ne.s32.totalorder %s319, %s320
      %p334 = scmp.eq.s32.totalorder %s34, 1
      %p335 = por %p333, %p334
      %p337 = scmp.ne.s32.totalorder %s320, %s336
      %p338 = scmp.eq.s32.totalorder %s34, 0
      %p339 = por %p337, %p338
      %p340 = scmp.le.s32.totalorder 1, %s28
      %p341 = scmp.lt.s32.totalorder %s28, 3
      %p342 = pnand %p340, %p341
      %p343 = pneg %p342
      // Predicated region
      $region9: #{tpu_custom_call.1} parent=5 // pred_check
        _
      $region10: #{tpu_custom_call.1} parent=5 // pred_check_branch
        %345 = sbr.rel (%p342) target = $region12
      $region11: #{tpu_custom_call.1} parent=5 // pred_region
        %s346 = ssub.s32 %s28, 1
        // Predicated region
        $region13: #{tpu_custom_call.1} parent=11 // pred_check
          %p347 = pneg %p75
        $region14: #{tpu_custom_call.1} parent=11 // pred_check_branch
          %349 = sbr.rel (%p347) target = $region16
        $region15: #{tpu_custom_call.1} parent=11 // pred_region
          %s351 = ssub.s32 16, 16
          %352 = vsyncadd [#allocation7], %s351
          %s354 = sshll.u32 [#allocation6], 4
          %s355 = int_to_ptr.vmem [resolvable:$true] %s354
          %357 = dma.hbm_to_vmem [thread:$0]  %s1, 16, %s355, [#allocation7]
        $region16: #{tpu_custom_call.1} parent=11 // pred_fallthru
          _
        // Predicated region
        $region17: #{tpu_custom_call.1} parent=11 // pred_check
          %p358 = pneg %p96
        $region18: #{tpu_custom_call.1} parent=11 // pred_check_branch
          %360 = sbr.rel (%p358) target = $region20
        $region19: #{tpu_custom_call.1} parent=11 // pred_region
          %s362 = ssub.s32 16, 16
          %363 = vsyncadd [#allocation7], %s362
          %s365 = sshll.u32 [#allocation8], 4
          %s366 = int_to_ptr.vmem [resolvable:$true] %s365
          %368 = dma.hbm_to_vmem [thread:$0]  %s2, 16, %s366, [#allocation7]
        $region20: #{tpu_custom_call.1} parent=11 // pred_fallthru
          _
        // Predicated region
        $region21: #{tpu_custom_call.1} parent=11 // pred_check
          %p369 = pneg %p117
        $region22: #{tpu_custom_call.1} parent=11 // pred_check_branch
          %371 = sbr.rel (%p369) target = $region24
        $region23: #{tpu_custom_call.1} parent=11 // pred_region
          %s373 = ssub.s32 3072, 3072
          %374 = vsyncadd [#allocation10], %s373
          %s375 = sshll.u32 [#allocation9], 4
          %s376 = int_to_ptr.vmem [resolvable:$true] %s375
          %381 = dma.hbm_to_vmem [thread:$0]  %s3, 3072, %s376, [#allocation10], 192, 192, 12
        $region24: #{tpu_custom_call.1} parent=11 // pred_fallthru
          _
        // Predicated region
        $region25: #{tpu_custom_call.1} parent=11 // pred_check
          %p382 = pneg %p138
        $region26: #{tpu_custom_call.1} parent=11 // pred_check_branch
          %384 = sbr.rel (%p382) target = $region28
        $region27: #{tpu_custom_call.1} parent=11 // pred_region
          _
        $region28: #{tpu_custom_call.1} parent=11 // pred_fallthru
          _
        // Predicated region
        $region29: #{tpu_custom_call.1} parent=11 // pred_check
          %p385 = pneg %p159
        $region30: #{tpu_custom_call.1} parent=11 // pred_check_branch
          %387 = sbr.rel (%p385) target = $region32
        $region31: #{tpu_custom_call.1} parent=11 // pred_region
          %s389 = ssub.s32 1024, 1024
          %390 = vsyncadd [#allocation10], %s389
          %s391 = sshll.u32 [#allocation11], 4
          %s392 = int_to_ptr.vmem [resolvable:$true] %s391
          %397 = dma.hbm_to_vmem [thread:$0]  %s5, 1024, %s392, [#allocation10], 64, 64, 4
        $region32: #{tpu_custom_call.1} parent=11 // pred_fallthru
          _
        // Predicated region
        $region33: #{tpu_custom_call.1} parent=11 // pred_check
          %p398 = pneg %p180
        $region34: #{tpu_custom_call.1} parent=11 // pred_check_branch
          %400 = sbr.rel (%p398) target = $region36
        $region35: #{tpu_custom_call.1} parent=11 // pred_region
          _
        $region36: #{tpu_custom_call.1} parent=11 // pred_fallthru
          _
        // Predicated region
        $region37: #{tpu_custom_call.1} parent=11 // pred_check
          %p401 = pneg %p201
        $region38: #{tpu_custom_call.1} parent=11 // pred_check_branch
          %403 = sbr.rel (%p401) target = $region40
        $region39: #{tpu_custom_call.1} parent=11 // pred_region
          _
        $region40: #{tpu_custom_call.1} parent=11 // pred_fallthru
          _
        // Predicated region
        $region41: #{tpu_custom_call.1} parent=11 // pred_check
          %p404 = pneg %p222
        $region42: #{tpu_custom_call.1} parent=11 // pred_check_branch
          %406 = sbr.rel (%p404) target = $region44
        $region43: #{tpu_custom_call.1} parent=11 // pred_region
          _
        $region44: #{tpu_custom_call.1} parent=11 // pred_fallthru
          _
        // Predicated region
        $region45: #{tpu_custom_call.1} parent=11 // pred_check
          %p407 = pneg %p243
        $region46: #{tpu_custom_call.1} parent=11 // pred_check_branch
          %409 = sbr.rel (%p407) target = $region48
        $region47: #{tpu_custom_call.1} parent=11 // pred_region
          %s411 = ssub.s32 4096, 4096
          %412 = vsyncadd [#allocation13], %s411
          %s413 = sshll.u32 [#allocation12], 4
          %s414 = int_to_ptr.vmem [resolvable:$true] %s413
          %419 = dma.hbm_to_vmem [thread:$0]  %s9, 4096, %s414, [#allocation13], 256, 256, 16
        $region48: #{tpu_custom_call.1} parent=11 // pred_fallthru
          _
        // Predicated region
        $region49: #{tpu_custom_call.1} parent=11 // pred_check
          %p420 = pneg %p264
        $region50: #{tpu_custom_call.1} parent=11 // pred_check_branch
          %422 = sbr.rel (%p420) target = $region52
        $region51: #{tpu_custom_call.1} parent=11 // pred_region
          _
        $region52: #{tpu_custom_call.1} parent=11 // pred_fallthru
          _
        // Predicated region
        $region53: #{tpu_custom_call.1} parent=11 // pred_check
          %p423 = pneg %p285
        $region54: #{tpu_custom_call.1} parent=11 // pred_check_branch
          %425 = sbr.rel (%p423) target = $region56
        $region55: #{tpu_custom_call.1} parent=11 // pred_region
          %s427 = ssub.s32 4096, 4096
          %428 = vsyncadd [#allocation13], %s427
          %s429 = sshll.u32 [#allocation14], 4
          %s430 = int_to_ptr.vmem [resolvable:$true] %s429
          %435 = dma.hbm_to_vmem [thread:$0]  %s11, 4096, %s430, [#allocation13], 64, 64, 4
        $region56: #{tpu_custom_call.1} parent=11 // pred_fallthru
          _
        // Predicated region
        $region57: #{tpu_custom_call.1} parent=11 // pred_check
          %p436 = pneg %p306
        $region58: #{tpu_custom_call.1} parent=11 // pred_check_branch
          %438 = sbr.rel (%p436) target = $region60
        $region59: #{tpu_custom_call.1} parent=11 // pred_region
          _
        $region60: #{tpu_custom_call.1} parent=11 // pred_fallthru
          _
      $region12: #{tpu_custom_call.1} parent=5 // pred_fallthru
        _
      %p439 = scmp.lt.s32.totalorder %s28, 2
      // Predicated region
      $region61: #{tpu_custom_call.1} parent=5 // pred_check
        %p440 = pneg %p439
      $region62: #{tpu_custom_call.1} parent=5 // pred_check_branch
        %442 = sbr.rel (%p440) target = $region64
      $region63: #{tpu_custom_call.1} parent=5 // pred_region
        // Predicated region
        $region65: #{tpu_custom_call.1} parent=63 // pred_check
          %p443 = pneg %p48
        $region66: #{tpu_custom_call.1} parent=63 // pred_check_branch
          %445 = sbr.rel (%p443) target = $region68
        $region67: #{tpu_custom_call.1} parent=63 // pred_region
          %s446 = sand.u32 %s38, 1
          %s447 = scalar_lea.sflag [#allocation4], %s446
          %s448 = sand.u32 %s38, 1
          %s449 = smul.addr %s448, 16
          %s450 = scalar_lea.vmem [#allocation3], %s449
          %s452 = ssub.s32 256, 256
          %453 = vsyncadd %s447, %s452
          %s454 = smul.addr %s28, 2
          %s455 = smul.addr %s454, 128
          %s456 = scalar_lea.hbm %s0, %s455
          %s457 = sshll.u32 %s450, 4
          %s458 = int_to_ptr.vmem [resolvable:$true] %s457
          %463 = dma.hbm_to_vmem [thread:$0]  %s456, 256, %s458, %s447, 128, 128, 8
        $region68: #{tpu_custom_call.1} parent=63 // pred_fallthru
          _
      $region64: #{tpu_custom_call.1} parent=5 // pred_fallthru
        _
      %p464 = scmp.le.s32.totalorder 1, %s28
      %p465 = scmp.lt.s32.totalorder %s28, 3
      %p466 = pnand %p464, %p465
      %p467 = pneg %p466
      // Predicated region
      $region69: #{tpu_custom_call.1} parent=5 // pred_check
        _
      $region70: #{tpu_custom_call.1} parent=5 // pred_check_branch
        %469 = sbr.rel (%p466) target = $region72
      $region71: #{tpu_custom_call.1} parent=5 // pred_region
        %s470 = ssub.s32 %s28, 1
        %s471 = sand.u32 %s41, 1
        %s472 = scalar_lea.sflag [#allocation4], %s471
        %s473 = sand.u32 %s41, 1
        %s474 = smul.addr %s473, 16
        %s475 = scalar_lea.vmem [#allocation3], %s474
        // Predicated region
        $region73: #{tpu_custom_call.1} parent=71 // pred_check
          %p476 = pneg %p54
        $region74: #{tpu_custom_call.1} parent=71 // pred_check_branch
          %478 = sbr.rel (%p476) target = $region76
        $region75: #{tpu_custom_call.1} parent=71 // pred_region
          %479 = dma.done %s472, 256
        $region76: #{tpu_custom_call.1} parent=71 // pred_fallthru
          _
        // Predicated region
        $region77: #{tpu_custom_call.1} parent=71 // pred_check
          %p480 = pneg %p75
        $region78: #{tpu_custom_call.1} parent=71 // pred_check_branch
          %482 = sbr.rel (%p480) target = $region80
        $region79: #{tpu_custom_call.1} parent=71 // pred_region
          %483 = dma.done [#allocation7], 16
        $region80: #{tpu_custom_call.1} parent=71 // pred_fallthru
          _
        // Predicated region
        $region81: #{tpu_custom_call.1} parent=71 // pred_check
          %p484 = pneg %p96
        $region82: #{tpu_custom_call.1} parent=71 // pred_check_branch
          %486 = sbr.rel (%p484) target = $region84
        $region83: #{tpu_custom_call.1} parent=71 // pred_region
          %487 = dma.done [#allocation7], 16
        $region84: #{tpu_custom_call.1} parent=71 // pred_fallthru
          _
        // Predicated region
        $region85: #{tpu_custom_call.1} parent=71 // pred_check
          %p488 = pneg %p117
        $region86: #{tpu_custom_call.1} parent=71 // pred_check_branch
          %490 = sbr.rel (%p488) target = $region88
        $region87: #{tpu_custom_call.1} parent=71 // pred_region
          %491 = dma.done [#allocation10], 3072
        $region88: #{tpu_custom_call.1} parent=71 // pred_fallthru
          _
        // Predicated region
        $region89: #{tpu_custom_call.1} parent=71 // pred_check
          %p492 = pneg %p159
        $region90: #{tpu_custom_call.1} parent=71 // pred_check_branch
          %494 = sbr.rel (%p492) target = $region92
        $region91: #{tpu_custom_call.1} parent=71 // pred_region
          %495 = dma.done [#allocation10], 1024
        $region92: #{tpu_custom_call.1} parent=71 // pred_fallthru
          _
        // Predicated region
        $region93: #{tpu_custom_call.1} parent=71 // pred_check
          %p496 = pneg %p243
        $region94: #{tpu_custom_call.1} parent=71 // pred_check_branch
          %498 = sbr.rel (%p496) target = $region96
        $region95: #{tpu_custom_call.1} parent=71 // pred_region
          %499 = dma.done [#allocation13], 4096
        $region96: #{tpu_custom_call.1} parent=71 // pred_fallthru
          _
        // Predicated region
        $region97: #{tpu_custom_call.1} parent=71 // pred_check
          %p500 = pneg %p285
        $region98: #{tpu_custom_call.1} parent=71 // pred_check_branch
          %502 = sbr.rel (%p500) target = $region100
        $region99: #{tpu_custom_call.1} parent=71 // pred_region
          %503 = dma.done [#allocation13], 4096
        $region100: #{tpu_custom_call.1} parent=71 // pred_fallthru
          _
        %s504 = sand.u32 %s41, 1
        %s505 = scalar_lea.sflag [#allocation4], %s504
        %s506 = sand.u32 %s41, 1
        %s507 = smul.addr %s506, 16
        %s508 = scalar_lea.vmem [#allocation3], %s507
        %p509 = pneg %p54
        %p510 = pneg %p51
        %p511 = pneg %p75
        %p512 = pneg %p72
        %p513 = pneg %p96
        %p514 = pneg %p93
        %p515 = pneg %p117
        %p516 = pneg %p114
        %p517 = pneg %p138
        %p518 = pneg %p135
        %p519 = pneg %p159
        %p520 = pneg %p156
        %p521 = pneg %p180
        %p522 = pneg %p177
        %p523 = pneg %p201
        %p524 = pneg %p198
        %p525 = pneg %p222
        %p526 = pneg %p219
        %p527 = pneg %p243
        %p528 = pneg %p240
        %p529 = pneg %p264
        %p530 = pneg %p261
        %p531 = pneg %p285
        %p532 = pneg %p282
        %p533 = pneg %p306
        %p534 = pneg %p303
        %p535 = pneg %p332
        %p536 = pneg %p329
        %s537 = sand.u32 %s319, 1
        %s538 = scalar_lea.sflag [#allocation5], %s537
        %s539 = sand.u32 %s319, 1
        %s540 = smul.addr %s539, 16
        %s541 = scalar_lea.vmem [#allocation15], %s540
        %v543 = vld [vmem:[%s475] sm:$0xff]
        %v544 = vld [vmem:[%s475 + $0x8] sm:$0xff]
        %v545 = vld [vmem:[#allocation6] sm:$0x1]
        %v546 = vld [vmem:[#allocation8] sm:$0x1]
        %547 = vadd.xlane.f32.xlu0 %v543
        %v548 = vpop.xlane.xlu0 %547
        %549 = vadd.xlane.f32.xlu0 %v544
        %v550 = vpop.xlane.xlu0 %549
        %v551 = vrcp.pop 128.0
        %v552 = vmul.f32 %v548, %v551
        %v553 = vmul.f32 %v550, %v551
        %v554 = vsub.f32 %v543, %v552
        %v555 = vsub.f32 %v544, %v553
        %v556 = vmul.f32 %v554, %v554
        %v557 = vmul.f32 %v555, %v555
        %558 = vadd.xlane.f32.xlu0 %v556
        %v559 = vpop.xlane.xlu0 %558
        %560 = vadd.xlane.f32.xlu0 %v557
        %v561 = vpop.xlane.xlu0 %560
        %v562 = vmul.f32 %v559, %v551
        %v563 = vmul.f32 %v561, %v551
        %v564 = vadd.f32 %v562, 1e-05
        %v565 = vadd.f32 %v563, 1e-05
        %v566 = vrsqrt.pop %v564
        %v567 = vrsqrt.pop %v565
        %v568 = vmul.f32 %v554, %v566
        %v569 = vmul.f32 %v555, %v567
        %v571 = vlaneseq
        %v572 = vshrl.u32 %v571, 7
        %v573 = vsub.s32 0, %v572
        %v574 = vrot.slane %v545, %v573
        %v576 = vmul.f32 %v568, %v574
        %v577 = vmul.f32 %v569, %v574
        %v579 = vlaneseq
        %v580 = vshrl.u32 %v579, 7
        %v581 = vsub.s32 0, %v580
        %v582 = vrot.slane %v546, %v581
        %v584 = vadd.f32 %v576, %v582
        %v585 = vadd.f32 %v577, %v582
        %v586 = vpack.c.bf16 %v585, %v584
        %v587 = vld [vmem:[#allocation9] sm:$0xff]
        %v588 = vld [vmem:[#allocation9 + $0x8] sm:$0xf]
        %v589 = vld [vmem:[#allocation9 + $0xc] sm:$0xff]
        %v590 = vld [vmem:[#allocation9 + $0x14] sm:$0xf]
        %v591 = vld [vmem:[#allocation9 + $0x18] sm:$0xff]
        %v592 = vld [vmem:[#allocation9 + $0x20] sm:$0xf]
        %v593 = vld [vmem:[#allocation9 + $0x24] sm:$0xff]
        %v594 = vld [vmem:[#allocation9 + $0x2c] sm:$0xf]
        %v595 = vld [vmem:[#allocation9 + $0x30] sm:$0xff]
        %v596 = vld [vmem:[#allocation9 + $0x38] sm:$0xf]
        %v597 = vld [vmem:[#allocation9 + $0x3c] sm:$0xff]
        %v598 = vld [vmem:[#allocation9 + $0x44] sm:$0xf]
        %v599 = vld [vmem:[#allocation9 + $0x48] sm:$0xff]
        %v600 = vld [vmem:[#allocation9 + $0x50] sm:$0xf]
        %v601 = vld [vmem:[#allocation9 + $0x54] sm:$0xff]
        %v602 = vld [vmem:[#allocation9 + $0x5c] sm:$0xf]
        %v603 = vld [vmem:[#allocation9 + $0x60] sm:$0xff]
        %v604 = vld [vmem:[#allocation9 + $0x68] sm:$0xf]
        %v605 = vld [vmem:[#allocation9 + $0x6c] sm:$0xff]
        %v606 = vld [vmem:[#allocation9 + $0x74] sm:$0xf]
        %v607 = vld [vmem:[#allocation9 + $0x78] sm:$0xff]
        %v608 = vld [vmem:[#allocation9 + $0x80] sm:$0xf]
        %v609 = vld [vmem:[#allocation9 + $0x84] sm:$0xff]
        %v610 = vld [vmem:[#allocation9 + $0x8c] sm:$0xf]
        %v611 = vld [vmem:[#allocation9 + $0x90] sm:$0xff]
        %v612 = vld [vmem:[#allocation9 + $0x98] sm:$0xf]
        %v613 = vld [vmem:[#allocation9 + $0x9c] sm:$0xff]
        %v614 = vld [vmem:[#allocation9 + $0xa4] sm:$0xf]
        %v615 = vld [vmem:[#allocation9 + $0xa8] sm:$0xff]
        %v616 = vld [vmem:[#allocation9 + $0xb0] sm:$0xf]
        %v617 = vld [vmem:[#allocation9 + $0xb4] sm:$0xff]
        %v618 = vld [vmem:[#allocation9 + $0xbc] sm:$0xf]
        %v619 = vld [vmem:[%s4] sm:$0x7]
        %v621 = vlaneseq
        %v622 = vshrl.u32 %v621, 7
        %v623 = vsub.s32 0, %v622
        %v624 = vrot.slane %v619, %v623
        %v625 = vlaneseq
        %v626 = vshrl.u32 %v625, 7
        %v627 = vsub.s32 1, %v626
        %v628 = vrot.slane %v619, %v627
        %v629 = vlaneseq
        %v630 = vshrl.u32 %v629, 7
        %v631 = vsub.s32 2, %v630
        %v632 = vrot.slane %v619, %v631
        %v668 = vunpack.c.l.b16 %v587
        %v669 = vunpack.c.h.b16 %v587
        %v670 = vunpack.c.l.b16 %v588
        %v671 = vunpack.c.l.b16 %v589
        %v672 = vunpack.c.h.b16 %v589
        %v673 = vunpack.c.l.b16 %v590
        %v674 = vunpack.c.l.b16 %v591
        %v675 = vunpack.c.h.b16 %v591
        %v676 = vunpack.c.l.b16 %v592
        %v677 = vunpack.c.l.b16 %v593
        %v678 = vunpack.c.h.b16 %v593
        %v679 = vunpack.c.l.b16 %v594
        %v680 = vunpack.c.l.b16 %v595
        %v681 = vunpack.c.h.b16 %v595
        %v682 = vunpack.c.l.b16 %v596
        %v683 = vunpack.c.l.b16 %v597
        %v684 = vunpack.c.h.b16 %v597
        %v685 = vunpack.c.l.b16 %v598
        %v686 = vunpack.c.l.b16 %v599
        %v687 = vunpack.c.h.b16 %v599
        %v688 = vunpack.c.l.b16 %v600
        %v689 = vunpack.c.l.b16 %v601
        %v690 = vunpack.c.h.b16 %v601
        %v691 = vunpack.c.l.b16 %v602
        %v692 = vunpack.c.l.b16 %v603
        %v693 = vunpack.c.h.b16 %v603
        %v694 = vunpack.c.l.b16 %v604
        %v695 = vunpack.c.l.b16 %v605
        %v696 = vunpack.c.h.b16 %v605
        %v697 = vunpack.c.l.b16 %v606
        %v698 = vunpack.c.l.b16 %v607
        %v699 = vunpack.c.h.b16 %v607
        %v700 = vunpack.c.l.b16 %v608
        %v701 = vunpack.c.l.b16 %v609
        %v702 = vunpack.c.h.b16 %v609
        %v703 = vunpack.c.l.b16 %v610
        %v704 = vunpack.c.l.b16 %v611
        %v705 = vunpack.c.h.b16 %v611
        %v706 = vunpack.c.l.b16 %v612
        %v707 = vunpack.c.l.b16 %v613
        %v708 = vunpack.c.h.b16 %v613
        %v709 = vunpack.c.l.b16 %v614
        %v710 = vunpack.c.l.b16 %v615
        %v711 = vunpack.c.h.b16 %v615
        %v712 = vunpack.c.l.b16 %v616
        %v713 = vunpack.c.l.b16 %v617
        %v714 = vunpack.c.h.b16 %v617
        %v715 = vunpack.c.l.b16 %v618
        %v716 = vpack.c.b16 %v671, %v668
        %v717 = vpack.c.b16 %v672, %v669
        %v718 = vpack.c.b16 %v673, %v670
        %v719 = vpack.c.b16 %v677, %v674
        %v720 = vpack.c.b16 %v678, %v675
        %v721 = vpack.c.b16 %v679, %v676
        %v722 = vpack.c.b16 %v683, %v680
        %v723 = vpack.c.b16 %v684, %v681
        %v724 = vpack.c.b16 %v685, %v682
        %v725 = vpack.c.b16 %v689, %v686
        %v726 = vpack.c.b16 %v690, %v687
        %v727 = vpack.c.b16 %v691, %v688
        %v728 = vpack.c.b16 %v695, %v692
        %v729 = vpack.c.b16 %v696, %v693
        %v730 = vpack.c.b16 %v697, %v694
        %v731 = vpack.c.b16 %v701, %v698
        %v732 = vpack.c.b16 %v702, %v699
        %v733 = vpack.c.b16 %v703, %v700
        %v734 = vpack.c.b16 %v707, %v704
        %v735 = vpack.c.b16 %v708, %v705
        %v736 = vpack.c.b16 %v709, %v706
        %v737 = vpack.c.b16 %v713, %v710
        %v738 = vpack.c.b16 %v714, %v711
        %v739 = vpack.c.b16 %v715, %v712
        %764 = vmatprep.subr.bf16.mxu0 %v717
        %765 = vmatpush1.bf16.msra.mxu0 %v716
        %766 = vmatprep.subr.bf16.mxu0 %v720
        %767 = vmatpush1.bf16.msra.mxu0 %v719
        %768 = vmatprep.subr.bf16.mxu0 %v723
        %769 = vmatpush1.bf16.msra.mxu0 %v722
        %770 = vmatprep.subr.bf16.mxu0 %v726
        %771 = vmatpush1.bf16.msra.mxu0 %v725
        %772 = vmatprep.subr.bf16.mxu0 %v729
        %773 = vmatpush1.bf16.msra.mxu0 %v728
        %774 = vmatprep.subr.bf16.mxu0 %v732
        %775 = vmatpush1.bf16.msra.mxu0 %v731
        %776 = vmatprep.subr.bf16.mxu0 %v735
        %777 = vmatpush1.bf16.msra.mxu0 %v734
        %778 = vmatprep.subr.bf16.mxu0 %v738
        %779 = vmatpush1.bf16.msra.mxu0 %v737
        %780 = vmatprep.subr.bf16.mxu0 0
        %781 = vmatpush1.bf16.msra.mxu0 0
        %782 = vmatprep.subr.bf16.mxu0 0
        %783 = vmatpush1.bf16.msra.mxu0 0
        %784 = vmatprep.subr.bf16.mxu0 0
        %785 = vmatpush1.bf16.msra.mxu0 0
        %786 = vmatprep.subr.bf16.mxu0 0
        %787 = vmatpush1.bf16.msra.mxu0 0
        %788 = vmatprep.subr.bf16.mxu0 0
        %789 = vmatpush1.bf16.msra.mxu0 0
        %790 = vmatprep.subr.bf16.mxu0 0
        %791 = vmatpush1.bf16.msra.mxu0 0
        %792 = vmatprep.subr.bf16.mxu0 0
        %793 = vmatpush1.bf16.msra.mxu0 0
        %794 = vmatprep.subr.bf16.mxu0 0
        %795 = vmatpush1.bf16.msra.mxu0 0
        %796 = vmatprep.mubr.bf16.mxu0 0
        %797 = vmatmul.mubr.bf16.gmra.mrb[0].mxu0 %v586
        %v798 = vpop.f32.mrb[0].mxu0
        %v799 = vadd.f32 %v624, %v798
        %v800 = vpop.f32.mrb[0].mxu0
        %v801 = vadd.f32 %v628, %v800
        %v802 = vpop.f32.mrb[0].mxu0
        %v803 = vadd.f32 %v624, %v802
        %v804 = vpop.f32.mrb[0].mxu0
        %v805 = vadd.f32 %v628, %v804
        %806 = vdwg.mxu0
        %807 = vmatprep.subr.bf16.mxu0 0
        %808 = vmatpush1.bf16.msra.mxu0 %v718
        %809 = vmatprep.subr.bf16.mxu0 0
        %810 = vmatpush1.bf16.msra.mxu0 %v721
        %811 = vmatprep.subr.bf16.mxu0 0
        %812 = vmatpush1.bf16.msra.mxu0 %v724
        %813 = vmatprep.subr.bf16.mxu0 0
        %814 = vmatpush1.bf16.msra.mxu0 %v727
        %815 = vmatprep.subr.bf16.mxu0 0
        %816 = vmatpush1.bf16.msra.mxu0 %v730
        %817 = vmatprep.subr.bf16.mxu0 0
        %818 = vmatpush1.bf16.msra.mxu0 %v733
        %819 = vmatprep.subr.bf16.mxu0 0
        %820 = vmatpush1.bf16.msra.mxu0 %v736
        %821 = vmatprep.subr.bf16.mxu0 0
        %822 = vmatpush1.bf16.msra.mxu0 %v739
        %823 = vmatprep.subr.bf16.mxu0 0
        %824 = vmatpush1.bf16.msra.mxu0 0
        %825 = vmatprep.subr.bf16.mxu0 0
        %826 = vmatpush1.bf16.msra.mxu0 0
        %827 = vmatprep.subr.bf16.mxu0 0
        %828 = vmatpush1.bf16.msra.mxu0 0
        %829 = vmatprep.subr.bf16.mxu0 0
        %830 = vmatpush1.bf16.msra.mxu0 0
        %831 = vmatprep.subr.bf16.mxu0 0
        %832 = vmatpush1.bf16.msra.mxu0 0
        %833 = vmatprep.subr.bf16.mxu0 0
        %834 = vmatpush1.bf16.msra.mxu0 0
        %835 = vmatprep.subr.bf16.mxu0 0
        %836 = vmatpush1.bf16.msra.mxu0 0
        %837 = vmatprep.subr.bf16.mxu0 0
        %838 = vmatpush1.bf16.msra.mxu0 0
        %839 = vmatprep.mubr.bf16.mxu0 0
        %840 = vmatmul.mubr.bf16.gmra.mrb[0].mxu0 %v586
        %v841 = vpop.f32.mrb[0].mxu0
        %v842 = vadd.f32 %v632, %v841
        %v843 = vpop.f32.mrb[0].mxu0
        %v844 = vpop.f32.mrb[0].mxu0
        %v845 = vadd.f32 %v632, %v844
        %v846 = vpop.f32.mrb[0].mxu0
        %847 = vdwg.mxu0
        %v848 = vlaneseq
        %v849 = vshrl.u32 %v848, 7
        %v850 = vadd.s32 %v849, 8
        %v851 = vlaneseq
        %v852 = vand.u32 %v851, 127
        %vm853 = vcmp.ge.s32.totalorder %v849, %v852
        %vm854 = vcmp.ge.s32.totalorder %v850, %v852
        %v855 = vpack.c.bf16 %v803, %v799
        %v856 = vpack.c.bf16 %v805, %v801
        %v857 = vpack.c.bf16 %v845, %v842
        %vm858 = vcmask 261120
        %v860 = vsel %vm858, %v855, 0
        %v863 = vsel %vm858, %v856, 0
        %865 = vmatprep.subr.bf16.mxu0 0
        %866 = vmatpush1.bf16.xpose.msra.mxu0 %v863
        %867 = vmatprep.subr.bf16.mxu0 0
        %868 = vmatpush1.bf16.xpose.msra.mxu0 0
        %869 = vmatprep.subr.bf16.mxu0 0
        %870 = vmatpush1.bf16.xpose.msra.mxu0 0
        %871 = vmatprep.subr.bf16.mxu0 0
        %872 = vmatpush1.bf16.xpose.msra.mxu0 0
        %873 = vmatprep.subr.bf16.mxu0 0
        %874 = vmatpush1.bf16.xpose.msra.mxu0 0
        %875 = vmatprep.subr.bf16.mxu0 0
        %876 = vmatpush1.bf16.xpose.msra.mxu0 0
        %877 = vmatprep.subr.bf16.mxu0 0
        %878 = vmatpush1.bf16.xpose.msra.mxu0 0
        %879 = vmatprep.subr.bf16.mxu0 0
        %880 = vmatpush1.bf16.xpose.msra.mxu0 0
        %881 = vmatprep.subr.bf16.mxu0 0
        %882 = vmatpush1.bf16.xpose.msra.mxu0 0
        %883 = vmatprep.subr.bf16.mxu0 0
        %884 = vmatpush1.bf16.xpose.msra.mxu0 0
        %885 = vmatprep.subr.bf16.mxu0 0
        %886 = vmatpush1.bf16.xpose.msra.mxu0 0
        %887 = vmatprep.subr.bf16.mxu0 0
        %888 = vmatpush1.bf16.xpose.msra.mxu0 0
        %889 = vmatprep.subr.bf16.mxu0 0
        %890 = vmatpush1.bf16.xpose.msra.mxu0 0
        %891 = vmatprep.subr.bf16.mxu0 0
        %892 = vmatpush1.bf16.xpose.msra.mxu0 0
        %893 = vmatprep.subr.bf16.mxu0 0
        %894 = vmatpush1.bf16.xpose.msra.mxu0 0
        %895 = vmatprep.subr.bf16.mxu0 0
        %896 = vmatpush1.bf16.xpose.msra.mxu0 0
        %897 = vmatprep.mubr.bf16.mxu0 0
        %898 = vmatmul.mubr.bf16.gmra.mrb[0].mxu0 %v860
        %v899 = vpop.f32.mrb[0].mxu0
        %v900 = vadd.f32 0.0, %v899
        %v901 = vpop.f32.mrb[0].mxu0
        %v902 = vpop.f32.mrb[0].mxu0
        %v903 = vadd.f32 0.0, %v902
        %v904 = vpop.f32.mrb[0].mxu0
        %905 = vdwg.mxu0
        %v906 = vmul.f32 %v900, 0.17677669
        %v907 = vmul.f32 %v903, 0.17677669
        %v908 = vsel %vm853, %v906, -1e+09
        %v909 = vsel %vm854, %v907, -1e+09
        %vm910 = vcmask 130048
        %v911 = vsel %vm910, %v908, -inf
        %912 = vmax.xlane.f32.xlu0 %v911
        %v913 = vpop.xlane.xlu0 %912
        %v914 = vsel %vm910, %v909, -inf
        %915 = vmax.xlane.f32.xlu0 %v914
        %v916 = vpop.xlane.xlu0 %915
        %v917 = vsub.f32 %v908, %v913
        %v918 = vsub.f32 %v909, %v916
        %v919 = vmul.f32 %v917, 1.442695
        %v920 = vpow.pop %v919
        %v921 = vmul.f32 %v918, 1.442695
        %v922 = vpow.pop %v921
        %v923 = vsel %vm910, %v920, 0.0
        %924 = vadd.xlane.f32.xlu0 %v923
        %v925 = vpop.xlane.xlu0 %924
        %v926 = vsel %vm910, %v922, 0.0
        %927 = vadd.xlane.f32.xlu0 %v926
        %v928 = vpop.xlane.xlu0 %927
        %v929 = vrcp.pop %v925
        %v930 = vrcp.pop %v928
        %v931 = vmul.f32 %v920, %v929
        %v932 = vmul.f32 %v922, %v930
        %v933 = vpack.c.bf16 %v932, %v931
        %v935 = vsel %vm910, %v933, 0
        %937 = vmatprep.subr.bf16.mxu0 0
        %938 = vmatpush1.bf16.msra.mxu0 %v857
        %939 = vmatprep.subr.bf16.mxu0 0
        %940 = vmatpush1.bf16.msra.mxu0 0
        %941 = vmatprep.subr.bf16.mxu0 0
        %942 = vmatpush1.bf16.msra.mxu0 0
        %943 = vmatprep.subr.bf16.mxu0 0
        %944 = vmatpush1.bf16.msra.mxu0 0
        %945 = vmatprep.subr.bf16.mxu0 0
        %946 = vmatpush1.bf16.msra.mxu0 0
        %947 = vmatprep.subr.bf16.mxu0 0
        %948 = vmatpush1.bf16.msra.mxu0 0
        %949 = vmatprep.subr.bf16.mxu0 0
        %950 = vmatpush1.bf16.msra.mxu0 0
        %951 = vmatprep.subr.bf16.mxu0 0
        %952 = vmatpush1.bf16.msra.mxu0 0
        %953 = vmatprep.subr.bf16.mxu0 0
        %954 = vmatpush1.bf16.msra.mxu0 0
        %955 = vmatprep.subr.bf16.mxu0 0
        %956 = vmatpush1.bf16.msra.mxu0 0
        %957 = vmatprep.subr.bf16.mxu0 0
        %958 = vmatpush1.bf16.msra.mxu0 0
        %959 = vmatprep.subr.bf16.mxu0 0
        %960 = vmatpush1.bf16.msra.mxu0 0
        %961 = vmatprep.subr.bf16.mxu0 0
        %962 = vmatpush1.bf16.msra.mxu0 0
        %963 = vmatprep.subr.bf16.mxu0 0
        %964 = vmatpush1.bf16.msra.mxu0 0
        %965 = vmatprep.subr.bf16.mxu0 0
        %966 = vmatpush1.bf16.msra.mxu0 0
        %967 = vmatprep.subr.bf16.mxu0 0
        %968 = vmatpush1.bf16.msra.mxu0 0
        %969 = vmatprep.mubr.bf16.mxu0 0
        %970 = vmatmul.mubr.bf16.gmra.mrb[0].mxu0 %v935
        %v971 = vpop.f32.mrb[0].mxu0
        %v972 = vadd.f32 0.0, %v971
        %v973 = vpop.f32.mrb[0].mxu0
        %v974 = vpop.f32.mrb[0].mxu0
        %v975 = vadd.f32 0.0, %v974
        %v976 = vpop.f32.mrb[0].mxu0
        %977 = vdwg.mxu0
        %978 = vst.msk [vmem:[#allocation2] sm:$0xff] %vm858, %v972
        %979 = vst.msk [vmem:[#allocation2 + $0x8] sm:$0xff] %vm858, %v975
        %981 = vrot.lane.b32.xlu0 %v855, 96
        %v982 = vpop.permute.xlu0 %981
        %984 = vrot.lane.b32.xlu0 %v856, 96
        %v985 = vpop.permute.xlu0 %984
        %v987 = vsel %vm858, %v982, 0
        %v990 = vsel %vm858, %v985, 0
        %992 = vmatprep.subr.bf16.mxu0 0
        %993 = vmatpush1.bf16.xpose.msra.mxu0 %v990
        %994 = vmatprep.subr.bf16.mxu0 0
        %995 = vmatpush1.bf16.xpose.msra.mxu0 0
        %996 = vmatprep.subr.bf16.mxu0 0
        %997 = vmatpush1.bf16.xpose.msra.mxu0 0
        %998 = vmatprep.subr.bf16.mxu0 0
        %999 = vmatpush1.bf16.xpose.msra.mxu0 0
        %1000 = vmatprep.subr.bf16.mxu0 0
        %1001 = vmatpush1.bf16.xpose.msra.mxu0 0
        %1002 = vmatprep.subr.bf16.mxu0 0
        %1003 = vmatpush1.bf16.xpose.msra.mxu0 0
        %1004 = vmatprep.subr.bf16.mxu0 0
        %1005 = vmatpush1.bf16.xpose.msra.mxu0 0
        %1006 = vmatprep.subr.bf16.mxu0 0
        %1007 = vmatpush1.bf16.xpose.msra.mxu0 0
        %1008 = vmatprep.subr.bf16.mxu0 0
        %1009 = vmatpush1.bf16.xpose.msra.mxu0 0
        %1010 = vmatprep.subr.bf16.mxu0 0
        %1011 = vmatpush1.bf16.xpose.msra.mxu0 0
        %1012 = vmatprep.subr.bf16.mxu0 0
        %1013 = vmatpush1.bf16.xpose.msra.mxu0 0
        %1014 = vmatprep.subr.bf16.mxu0 0
        %1015 = vmatpush1.bf16.xpose.msra.mxu0 0
        %1016 = vmatprep.subr.bf16.mxu0 0
        %1017 = vmatpush1.bf16.xpose.msra.mxu0 0
        %1018 = vmatprep.subr.bf16.mxu0 0
        %1019 = vmatpush1.bf16.xpose.msra.mxu0 0
        %1020 = vmatprep.subr.bf16.mxu0 0
        %1021 = vmatpush1.bf16.xpose.msra.mxu0 0
        %1022 = vmatprep.subr.bf16.mxu0 0
        %1023 = vmatpush1.bf16.xpose.msra.mxu0 0
        %1024 = vmatprep.mubr.bf16.mxu0 0
        %1025 = vmatmul.mubr.bf16.gmra.mrb[0].mxu0 %v987
        %v1026 = vpop.f32.mrb[0].mxu0
        %v1027 = vadd.f32 0.0, %v1026
        %v1028 = vpop.f32.mrb[0].mxu0
        %v1029 = vpop.f32.mrb[0].mxu0
        %v1030 = vadd.f32 0.0, %v1029
        %v1031 = vpop.f32.mrb[0].mxu0
        %1032 = vdwg.mxu0
        %v1033 = vmul.f32 %v1027, 0.17677669
        %v1034 = vmul.f32 %v1030, 0.17677669
        %v1035 = vsel %vm853, %v1033, -1e+09
        %v1036 = vsel %vm854, %v1034, -1e+09
        %v1037 = vsel %vm910, %v1035, -inf
        %1038 = vmax.xlane.f32.xlu0 %v1037
        %v1039 = vpop.xlane.xlu0 %1038
        %v1040 = vsel %vm910, %v1036, -inf
        %1041 = vmax.xlane.f32.xlu0 %v1040
        %v1042 = vpop.xlane.xlu0 %1041
        %v1043 = vsub.f32 %v1035, %v1039
        %v1044 = vsub.f32 %v1036, %v1042
        %v1045 = vmul.f32 %v1043, 1.442695
        %v1046 = vpow.pop %v1045
        %v1047 = vmul.f32 %v1044, 1.442695
        %v1048 = vpow.pop %v1047
        %v1049 = vsel %vm910, %v1046, 0.0
        %1050 = vadd.xlane.f32.xlu0 %v1049
        %v1051 = vpop.xlane.xlu0 %1050
        %v1052 = vsel %vm910, %v1048, 0.0
        %1053 = vadd.xlane.f32.xlu0 %v1052
        %v1054 = vpop.xlane.xlu0 %1053
        %v1055 = vrcp.pop %v1051
        %v1056 = vrcp.pop %v1054
        %v1057 = vmul.f32 %v1046, %v1055
        %v1058 = vmul.f32 %v1048, %v1056
        %v1059 = vpack.c.bf16 %v1058, %v1057
        %1061 = vrot.lane.b32.xlu0 %v857, 96
        %v1062 = vpop.permute.xlu0 %1061
        %v1065 = vsel %vm910, %v1059, 0
        %1067 = vmatprep.subr.bf16.mxu0 0
        %1068 = vmatpush1.bf16.msra.mxu0 %v1062
        %1069 = vmatprep.subr.bf16.mxu0 0
        %1070 = vmatpush1.bf16.msra.mxu0 0
        %1071 = vmatprep.subr.bf16.mxu0 0
        %1072 = vmatpush1.bf16.msra.mxu0 0
        %1073 = vmatprep.subr.bf16.mxu0 0
        %1074 = vmatpush1.bf16.msra.mxu0 0
        %1075 = vmatprep.subr.bf16.mxu0 0
        %1076 = vmatpush1.bf16.msra.mxu0 0
        %1077 = vmatprep.subr.bf16.mxu0 0
        %1078 = vmatpush1.bf16.msra.mxu0 0
        %1079 = vmatprep.subr.bf16.mxu0 0
        %1080 = vmatpush1.bf16.msra.mxu0 0
        %1081 = vmatprep.subr.bf16.mxu0 0
        %1082 = vmatpush1.bf16.msra.mxu0 0
        %1083 = vmatprep.subr.bf16.mxu0 0
        %1084 = vmatpush1.bf16.msra.mxu0 0
        %1085 = vmatprep.subr.bf16.mxu0 0
        %1086 = vmatpush1.bf16.msra.mxu0 0
        %1087 = vmatprep.subr.bf16.mxu0 0
        %1088 = vmatpush1.bf16.msra.mxu0 0
        %1089 = vmatprep.subr.bf16.mxu0 0
        %1090 = vmatpush1.bf16.msra.mxu0 0
        %1091 = vmatprep.subr.bf16.mxu0 0
        %1092 = vmatpush1.bf16.msra.mxu0 0
        %1093 = vmatprep.subr.bf16.mxu0 0
        %1094 = vmatpush1.bf16.msra.mxu0 0
        %1095 = vmatprep.subr.bf16.mxu0 0
        %1096 = vmatpush1.bf16.msra.mxu0 0
        %1097 = vmatprep.subr.bf16.mxu0 0
        %1098 = vmatpush1.bf16.msra.mxu0 0
        %1099 = vmatprep.mubr.bf16.mxu0 0
        %1100 = vmatmul.mubr.bf16.gmra.mrb[0].mxu0 %v1065
        %v1101 = vpop.f32.mrb[0].mxu0
        %v1102 = vadd.f32 0.0, %v1101
        %v1103 = vpop.f32.mrb[0].mxu0
        %v1104 = vpop.f32.mrb[0].mxu0
        %v1105 = vadd.f32 0.0, %v1104
        %v1106 = vpop.f32.mrb[0].mxu0
        %1107 = vdwg.mxu0
        %1110 = vrot.lane.b32.xlu0 %v1102, 32
        %v1111 = vpop.permute.xlu0 %1110
        %1112 = vrot.lane.b32.xlu0 %v1105, 32
        %v1113 = vpop.permute.xlu0 %1112
        %vm1116 = vcmask 523520
        %1117 = vst.msk [vmem:[#allocation2] sm:$0xff] %vm1116, %v1111
        %1118 = vst.msk [vmem:[#allocation2 + $0x8] sm:$0xff] %vm1116, %v1113
        %1119 = vrot.lane.b32.xlu0 %v855, 64
        %v1120 = vpop.permute.xlu0 %1119
        %1121 = vrot.lane.b32.xlu0 %v856, 64
        %v1122 = vpop.permute.xlu0 %1121
        %v1124 = vsel %vm858, %v1120, 0
        %v1127 = vsel %vm858, %v1122, 0
        %1129 = vmatprep.subr.bf16.mxu0 0
        %1130 = vmatpush1.bf16.xpose.msra.mxu0 %v1127
        %1131 = vmatprep.subr.bf16.mxu0 0
        %1132 = vmatpush1.bf16.xpose.msra.mxu0 0
        %1133 = vmatprep.subr.bf16.mxu0 0
        %1134 = vmatpush1.bf16.xpose.msra.mxu0 0
        %1135 = vmatprep.subr.bf16.mxu0 0
        %1136 = vmatpush1.bf16.xpose.msra.mxu0 0
        %1137 = vmatprep.subr.bf16.mxu0 0
        %1138 = vmatpush1.bf16.xpose.msra.mxu0 0
        %1139 = vmatprep.subr.bf16.mxu0 0
        %1140 = vmatpush1.bf16.xpose.msra.mxu0 0
        %1141 = vmatprep.subr.bf16.mxu0 0
        %1142 = vmatpush1.bf16.xpose.msra.mxu0 0
        %1143 = vmatprep.subr.bf16.mxu0 0
        %1144 = vmatpush1.bf16.xpose.msra.mxu0 0
        %1145 = vmatprep.subr.bf16.mxu0 0
        %1146 = vmatpush1.bf16.xpose.msra.mxu0 0
        %1147 = vmatprep.subr.bf16.mxu0 0
        %1148 = vmatpush1.bf16.xpose.msra.mxu0 0
        %1149 = vmatprep.subr.bf16.mxu0 0
        %1150 = vmatpush1.bf16.xpose.msra.mxu0 0
        %1151 = vmatprep.subr.bf16.mxu0 0
        %1152 = vmatpush1.bf16.xpose.msra.mxu0 0
        %1153 = vmatprep.subr.bf16.mxu0 0
        %1154 = vmatpush1.bf16.xpose.msra.mxu0 0
        %1155 = vmatprep.subr.bf16.mxu0 0
        %1156 = vmatpush1.bf16.xpose.msra.mxu0 0
        %1157 = vmatprep.subr.bf16.mxu0 0
        %1158 = vmatpush1.bf16.xpose.msra.mxu0 0
        %1159 = vmatprep.subr.bf16.mxu0 0
        %1160 = vmatpush1.bf16.xpose.msra.mxu0 0
        %1161 = vmatprep.mubr.bf16.mxu0 0
        %1162 = vmatmul.mubr.bf16.gmra.mrb[0].mxu0 %v1124
        %v1163 = vpop.f32.mrb[0].mxu0
        %v1164 = vadd.f32 0.0, %v1163
        %v1165 = vpop.f32.mrb[0].mxu0
        %v1166 = vpop.f32.mrb[0].mxu0
        %v1167 = vadd.f32 0.0, %v1166
        %v1168 = vpop.f32.mrb[0].mxu0
        %1169 = vdwg.mxu0
        %v1170 = vmul.f32 %v1164, 0.17677669
        %v1171 = vmul.f32 %v1167, 0.17677669
        %v1172 = vsel %vm853, %v1170, -1e+09
        %v1173 = vsel %vm854, %v1171, -1e+09
        %v1174 = vsel %vm910, %v1172, -inf
        %1175 = vmax.xlane.f32.xlu0 %v1174
        %v1176 = vpop.xlane.xlu0 %1175
        %v1177 = vsel %vm910, %v1173, -inf
        %1178 = vmax.xlane.f32.xlu0 %v1177
        %v1179 = vpop.xlane.xlu0 %1178
        %v1180 = vsub.f32 %v1172, %v1176
        %v1181 = vsub.f32 %v1173, %v1179
        %v1182 = vmul.f32 %v1180, 1.442695
        %v1183 = vpow.pop %v1182
        %v1184 = vmul.f32 %v1181, 1.442695
        %v1185 = vpow.pop %v1184
        %v1186 = vsel %vm910, %v1183, 0.0
        %1187 = vadd.xlane.f32.xlu0 %v1186
        %v1188 = vpop.xlane.xlu0 %1187
        %v1189 = vsel %vm910, %v1185, 0.0
        %1190 = vadd.xlane.f32.xlu0 %v1189
        %v1191 = vpop.xlane.xlu0 %1190
        %v1192 = vrcp.pop %v1188
        %v1193 = vrcp.pop %v1191
        %v1194 = vmul.f32 %v1183, %v1192
        %v1195 = vmul.f32 %v1185, %v1193
        %v1196 = vpack.c.bf16 %v1195, %v1194
        %1197 = vrot.lane.b32.xlu0 %v857, 64
        %v1198 = vpop.permute.xlu0 %1197
        %v1201 = vsel %vm910, %v1196, 0
        %1203 = vmatprep.subr.bf16.mxu0 0
        %1204 = vmatpush1.bf16.msra.mxu0 %v1198
        %1205 = vmatprep.subr.bf16.mxu0 0
        %1206 = vmatpush1.bf16.msra.mxu0 0
        %1207 = vmatprep.subr.bf16.mxu0 0
        %1208 = vmatpush1.bf16.msra.mxu0 0
        %1209 = vmatprep.subr.bf16.mxu0 0
        %1210 = vmatpush1.bf16.msra.mxu0 0
        %1211 = vmatprep.subr.bf16.mxu0 0
        %1212 = vmatpush1.bf16.msra.mxu0 0
        %1213 = vmatprep.subr.bf16.mxu0 0
        %1214 = vmatpush1.bf16.msra.mxu0 0
        %1215 = vmatprep.subr.bf16.mxu0 0
        %1216 = vmatpush1.bf16.msra.mxu0 0
        %1217 = vmatprep.subr.bf16.mxu0 0
        %1218 = vmatpush1.bf16.msra.mxu0 0
        %1219 = vmatprep.subr.bf16.mxu0 0
        %1220 = vmatpush1.bf16.msra.mxu0 0
        %1221 = vmatprep.subr.bf16.mxu0 0
        %1222 = vmatpush1.bf16.msra.mxu0 0
        %1223 = vmatprep.subr.bf16.mxu0 0
        %1224 = vmatpush1.bf16.msra.mxu0 0
        %1225 = vmatprep.subr.bf16.mxu0 0
        %1226 = vmatpush1.bf16.msra.mxu0 0
        %1227 = vmatprep.subr.bf16.mxu0 0
        %1228 = vmatpush1.bf16.msra.mxu0 0
        %1229 = vmatprep.subr.bf16.mxu0 0
        %1230 = vmatpush1.bf16.msra.mxu0 0
        %1231 = vmatprep.subr.bf16.mxu0 0
        %1232 = vmatpush1.bf16.msra.mxu0 0
        %1233 = vmatprep.subr.bf16.mxu0 0
        %1234 = vmatpush1.bf16.msra.mxu0 0
        %1235 = vmatprep.mubr.bf16.mxu0 0
        %1236 = vmatmul.mubr.bf16.gmra.mrb[0].mxu0 %v1201
        %v1237 = vpop.f32.mrb[0].mxu0
        %v1238 = vadd.f32 0.0, %v1237
        %v1239 = vpop.f32.mrb[0].mxu0
        %v1240 = vpop.f32.mrb[0].mxu0
        %v1241 = vadd.f32 0.0, %v1240
        %v1242 = vpop.f32.mrb[0].mxu0
        %1243 = vdwg.mxu0
        %1246 = vrot.lane.b32.xlu0 %v1238, 64
        %v1247 = vpop.permute.xlu0 %1246
        %1248 = vrot.lane.b32.xlu0 %v1241, 64
        %v1249 = vpop.permute.xlu0 %1248
        %vm1252 = vcmask 785920
        %1253 = vst.msk [vmem:[#allocation2] sm:$0xff] %vm1252, %v1247
        %1254 = vst.msk [vmem:[#allocation2 + $0x8] sm:$0xff] %vm1252, %v1249
        %1255 = vrot.lane.b32.xlu0 %v855, 32
        %v1256 = vpop.permute.xlu0 %1255
        %1257 = vrot.lane.b32.xlu0 %v856, 32
        %v1258 = vpop.permute.xlu0 %1257
        %v1260 = vsel %vm858, %v1256, 0
        %v1263 = vsel %vm858, %v1258, 0
        %1265 = vmatprep.subr.bf16.mxu0 0
        %1266 = vmatpush1.bf16.xpose.msra.mxu0 %v1263
        %1267 = vmatprep.subr.bf16.mxu0 0
        %1268 = vmatpush1.bf16.xpose.msra.mxu0 0
        %1269 = vmatprep.subr.bf16.mxu0 0
        %1270 = vmatpush1.bf16.xpose.msra.mxu0 0
        %1271 = vmatprep.subr.bf16.mxu0 0
        %1272 = vmatpush1.bf16.xpose.msra.mxu0 0
        %1273 = vmatprep.subr.bf16.mxu0 0
        %1274 = vmatpush1.bf16.xpose.msra.mxu0 0
        %1275 = vmatprep.subr.bf16.mxu0 0
        %1276 = vmatpush1.bf16.xpose.msra.mxu0 0
        %1277 = vmatprep.subr.bf16.mxu0 0
        %1278 = vmatpush1.bf16.xpose.msra.mxu0 0
        %1279 = vmatprep.subr.bf16.mxu0 0
        %1280 = vmatpush1.bf16.xpose.msra.mxu0 0
        %1281 = vmatprep.subr.bf16.mxu0 0
        %1282 = vmatpush1.bf16.xpose.msra.mxu0 0
        %1283 = vmatprep.subr.bf16.mxu0 0
        %1284 = vmatpush1.bf16.xpose.msra.mxu0 0
        %1285 = vmatprep.subr.bf16.mxu0 0
        %1286 = vmatpush1.bf16.xpose.msra.mxu0 0
        %1287 = vmatprep.subr.bf16.mxu0 0
        %1288 = vmatpush1.bf16.xpose.msra.mxu0 0
        %1289 = vmatprep.subr.bf16.mxu0 0
        %1290 = vmatpush1.bf16.xpose.msra.mxu0 0
        %1291 = vmatprep.subr.bf16.mxu0 0
        %1292 = vmatpush1.bf16.xpose.msra.mxu0 0
        %1293 = vmatprep.subr.bf16.mxu0 0
        %1294 = vmatpush1.bf16.xpose.msra.mxu0 0
        %1295 = vmatprep.subr.bf16.mxu0 0
        %1296 = vmatpush1.bf16.xpose.msra.mxu0 0
        %1297 = vmatprep.mubr.bf16.mxu0 0
        %1298 = vmatmul.mubr.bf16.gmra.mrb[0].mxu0 %v1260
        %v1299 = vpop.f32.mrb[0].mxu0
        %v1300 = vadd.f32 0.0, %v1299
        %v1301 = vpop.f32.mrb[0].mxu0
        %v1302 = vpop.f32.mrb[0].mxu0
        %v1303 = vadd.f32 0.0, %v1302
        %v1304 = vpop.f32.mrb[0].mxu0
        %1305 = vdwg.mxu0
        %v1306 = vmul.f32 %v1300, 0.17677669
        %v1307 = vmul.f32 %v1303, 0.17677669
        %v1308 = vsel %vm853, %v1306, -1e+09
        %v1309 = vsel %vm854, %v1307, -1e+09
        %v1310 = vsel %vm910, %v1308, -inf
        %1311 = vmax.xlane.f32.xlu0 %v1310
        %v1312 = vpop.xlane.xlu0 %1311
        %v1313 = vsel %vm910, %v1309, -inf
        %1314 = vmax.xlane.f32.xlu0 %v1313
        %v1315 = vpop.xlane.xlu0 %1314
        %v1316 = vsub.f32 %v1308, %v1312
        %v1317 = vsub.f32 %v1309, %v1315
        %v1318 = vmul.f32 %v1316, 1.442695
        %v1319 = vpow.pop %v1318
        %v1320 = vmul.f32 %v1317, 1.442695
        %v1321 = vpow.pop %v1320
        %v1322 = vsel %vm910, %v1319, 0.0
        %1323 = vadd.xlane.f32.xlu0 %v1322
        %v1324 = vpop.xlane.xlu0 %1323
        %v1325 = vsel %vm910, %v1321, 0.0
        %1326 = vadd.xlane.f32.xlu0 %v1325
        %v1327 = vpop.xlane.xlu0 %1326
        %v1328 = vrcp.pop %v1324
        %v1329 = vrcp.pop %v1327
        %v1330 = vmul.f32 %v1319, %v1328
        %v1331 = vmul.f32 %v1321, %v1329
        %v1332 = vpack.c.bf16 %v1331, %v1330
        %1333 = vrot.lane.b32.xlu0 %v857, 32
        %v1334 = vpop.permute.xlu0 %1333
        %v1337 = vsel %vm910, %v1332, 0
        %1339 = vmatprep.subr.bf16.mxu0 0
        %1340 = vmatpush1.bf16.msra.mxu0 %v1334
        %1341 = vmatprep.subr.bf16.mxu0 0
        %1342 = vmatpush1.bf16.msra.mxu0 0
        %1343 = vmatprep.subr.bf16.mxu0 0
        %1344 = vmatpush1.bf16.msra.mxu0 0
        %1345 = vmatprep.subr.bf16.mxu0 0
        %1346 = vmatpush1.bf16.msra.mxu0 0
        %1347 = vmatprep.subr.bf16.mxu0 0
        %1348 = vmatpush1.bf16.msra.mxu0 0
        %1349 = vmatprep.subr.bf16.mxu0 0
        %1350 = vmatpush1.bf16.msra.mxu0 0
        %1351 = vmatprep.subr.bf16.mxu0 0
        %1352 = vmatpush1.bf16.msra.mxu0 0
        %1353 = vmatprep.subr.bf16.mxu0 0
        %1354 = vmatpush1.bf16.msra.mxu0 0
        %1355 = vmatprep.subr.bf16.mxu0 0
        %1356 = vmatpush1.bf16.msra.mxu0 0
        %1357 = vmatprep.subr.bf16.mxu0 0
        %1358 = vmatpush1.bf16.msra.mxu0 0
        %1359 = vmatprep.subr.bf16.mxu0 0
        %1360 = vmatpush1.bf16.msra.mxu0 0
        %1361 = vmatprep.subr.bf16.mxu0 0
        %1362 = vmatpush1.bf16.msra.mxu0 0
        %1363 = vmatprep.subr.bf16.mxu0 0
        %1364 = vmatpush1.bf16.msra.mxu0 0
        %1365 = vmatprep.subr.bf16.mxu0 0
        %1366 = vmatpush1.bf16.msra.mxu0 0
        %1367 = vmatprep.subr.bf16.mxu0 0
        %1368 = vmatpush1.bf16.msra.mxu0 0
        %1369 = vmatprep.subr.bf16.mxu0 0
        %1370 = vmatpush1.bf16.msra.mxu0 0
        %1371 = vmatprep.mubr.bf16.mxu0 0
        %1372 = vmatmul.mubr.bf16.gmra.mrb[0].mxu0 %v1337
        %v1373 = vpop.f32.mrb[0].mxu0
        %v1374 = vadd.f32 0.0, %v1373
        %v1375 = vpop.f32.mrb[0].mxu0
        %v1376 = vpop.f32.mrb[0].mxu0
        %v1377 = vadd.f32 0.0, %v1376
        %v1378 = vpop.f32.mrb[0].mxu0
        %1379 = vdwg.mxu0
        %1382 = vrot.lane.b32.xlu0 %v1374, 96
        %v1383 = vpop.permute.xlu0 %1382
        %1384 = vrot.lane.b32.xlu0 %v1377, 96
        %v1385 = vpop.permute.xlu0 %1384
        %vm1388 = vcmask 1048320
        %1389 = vst.msk [vmem:[#allocation2] sm:$0xff] %vm1388, %v1383
        %1390 = vst.msk [vmem:[#allocation2 + $0x8] sm:$0xff] %vm1388, %v1385
        %v1391 = vld [vmem:[#allocation2] sm:$0xff]
        %v1392 = vld [vmem:[#allocation2 + $0x8] sm:$0xff]
        %v1393 = vpack.c.bf16 %v1392, %v1391
        %v1394 = vld [vmem:[#allocation11] sm:$0xf]
        %v1395 = vld [vmem:[#allocation11 + $0x4] sm:$0xf]
        %v1396 = vld [vmem:[#allocation11 + $0x8] sm:$0xf]
        %v1397 = vld [vmem:[#allocation11 + $0xc] sm:$0xf]
        %v1398 = vld [vmem:[#allocation11 + $0x10] sm:$0xf]
        %v1399 = vld [vmem:[#allocation11 + $0x14] sm:$0xf]
        %v1400 = vld [vmem:[#allocation11 + $0x18] sm:$0xf]
        %v1401 = vld [vmem:[#allocation11 + $0x1c] sm:$0xf]
        %v1402 = vld [vmem:[#allocation11 + $0x20] sm:$0xf]
        %v1403 = vld [vmem:[#allocation11 + $0x24] sm:$0xf]
        %v1404 = vld [vmem:[#allocation11 + $0x28] sm:$0xf]
        %v1405 = vld [vmem:[#allocation11 + $0x2c] sm:$0xf]
        %v1406 = vld [vmem:[#allocation11 + $0x30] sm:$0xf]
        %v1407 = vld [vmem:[#allocation11 + $0x34] sm:$0xf]
        %v1408 = vld [vmem:[#allocation11 + $0x38] sm:$0xf]
        %v1409 = vld [vmem:[#allocation11 + $0x3c] sm:$0xf]
        %v1410 = vld [vmem:[%s6] sm:$0x1]
        %v1412 = vlaneseq
        %v1413 = vshrl.u32 %v1412, 7
        %v1414 = vsub.s32 0, %v1413
        %v1415 = vrot.slane %v1410, %v1414
        %v1433 = vunpack.c.l.b16 %v1394
        %v1434 = vunpack.c.l.b16 %v1395
        %v1435 = vunpack.c.l.b16 %v1396
        %v1436 = vunpack.c.l.b16 %v1397
        %v1437 = vunpack.c.l.b16 %v1398
        %v1438 = vunpack.c.l.b16 %v1399
        %v1439 = vunpack.c.l.b16 %v1400
        %v1440 = vunpack.c.l.b16 %v1401
        %v1441 = vunpack.c.l.b16 %v1402
        %v1442 = vunpack.c.l.b16 %v1403
        %v1443 = vunpack.c.l.b16 %v1404
        %v1444 = vunpack.c.l.b16 %v1405
        %v1445 = vunpack.c.l.b16 %v1406
        %v1446 = vunpack.c.l.b16 %v1407
        %v1447 = vunpack.c.l.b16 %v1408
        %v1448 = vunpack.c.l.b16 %v1409
        %v1449 = vpack.c.b16 %v1434, %v1433
        %v1450 = vpack.c.b16 %v1436, %v1435
        %v1451 = vpack.c.b16 %v1438, %v1437
        %v1452 = vpack.c.b16 %v1440, %v1439
        %v1453 = vpack.c.b16 %v1442, %v1441
        %v1454 = vpack.c.b16 %v1444, %v1443
        %v1455 = vpack.c.b16 %v1446, %v1445
        %v1456 = vpack.c.b16 %v1448, %v1447
        %1465 = vmatprep.subr.bf16.mxu0 0
        %1466 = vmatpush1.bf16.msra.mxu0 %v1449
        %1467 = vmatprep.subr.bf16.mxu0 0
        %1468 = vmatpush1.bf16.msra.mxu0 %v1450
        %1469 = vmatprep.subr.bf16.mxu0 0
        %1470 = vmatpush1.bf16.msra.mxu0 %v1451
        %1471 = vmatprep.subr.bf16.mxu0 0
        %1472 = vmatpush1.bf16.msra.mxu0 %v1452
        %1473 = vmatprep.subr.bf16.mxu0 0
        %1474 = vmatpush1.bf16.msra.mxu0 %v1453
        %1475 = vmatprep.subr.bf16.mxu0 0
        %1476 = vmatpush1.bf16.msra.mxu0 %v1454
        %1477 = vmatprep.subr.bf16.mxu0 0
        %1478 = vmatpush1.bf16.msra.mxu0 %v1455
        %1479 = vmatprep.subr.bf16.mxu0 0
        %1480 = vmatpush1.bf16.msra.mxu0 %v1456
        %1481 = vmatprep.subr.bf16.mxu0 0
        %1482 = vmatpush1.bf16.msra.mxu0 0
        %1483 = vmatprep.subr.bf16.mxu0 0
        %1484 = vmatpush1.bf16.msra.mxu0 0
        %1485 = vmatprep.subr.bf16.mxu0 0
        %1486 = vmatpush1.bf16.msra.mxu0 0
        %1487 = vmatprep.subr.bf16.mxu0 0
        %1488 = vmatpush1.bf16.msra.mxu0 0
        %1489 = vmatprep.subr.bf16.mxu0 0
        %1490 = vmatpush1.bf16.msra.mxu0 0
        %1491 = vmatprep.subr.bf16.mxu0 0
        %1492 = vmatpush1.bf16.msra.mxu0 0
        %1493 = vmatprep.subr.bf16.mxu0 0
        %1494 = vmatpush1.bf16.msra.mxu0 0
        %1495 = vmatprep.subr.bf16.mxu0 0
        %1496 = vmatpush1.bf16.msra.mxu0 0
        %1497 = vmatprep.mubr.bf16.mxu0 0
        %1498 = vmatmul.mubr.bf16.gmra.mrb[0].mxu0 %v1393
        %v1499 = vpop.f32.mrb[0].mxu0
        %v1500 = vadd.f32 %v1415, %v1499
        %v1501 = vpop.f32.mrb[0].mxu0
        %v1502 = vpop.f32.mrb[0].mxu0
        %v1503 = vadd.f32 %v1415, %v1502
        %v1504 = vpop.f32.mrb[0].mxu0
        %1505 = vdwg.mxu0
        %v1506 = vadd.f32 %v543, %v1500
        %v1507 = vadd.f32 %v544, %v1503
        %v1508 = vld [vmem:[%s7] sm:$0x1]
        %v1509 = vld [vmem:[%s8] sm:$0x1]
        %1510 = vadd.xlane.f32.xlu0 %v1506
        %v1511 = vpop.xlane.xlu0 %1510
        %1512 = vadd.xlane.f32.xlu0 %v1507
        %v1513 = vpop.xlane.xlu0 %1512
        %v1514 = vmul.f32 %v1511, %v551
        %v1515 = vmul.f32 %v1513, %v551
        %v1516 = vsub.f32 %v1506, %v1514
        %v1517 = vsub.f32 %v1507, %v1515
        %v1518 = vmul.f32 %v1516, %v1516
        %v1519 = vmul.f32 %v1517, %v1517
        %1520 = vadd.xlane.f32.xlu0 %v1518
        %v1521 = vpop.xlane.xlu0 %1520
        %1522 = vadd.xlane.f32.xlu0 %v1519
        %v1523 = vpop.xlane.xlu0 %1522
        %v1524 = vmul.f32 %v1521, %v551
        %v1525 = vmul.f32 %v1523, %v551
        %v1526 = vadd.f32 %v1524, 1e-05
        %v1527 = vadd.f32 %v1525, 1e-05
        %v1528 = vrsqrt.pop %v1526
        %v1529 = vrsqrt.pop %v1527
        %v1530 = vmul.f32 %v1516, %v1528
        %v1531 = vmul.f32 %v1517, %v1529
        %v1533 = vlaneseq
        %v1534 = vshrl.u32 %v1533, 7
        %v1535 = vsub.s32 0, %v1534
        %v1536 = vrot.slane %v1508, %v1535
        %v1538 = vmul.f32 %v1530, %v1536
        %v1539 = vmul.f32 %v1531, %v1536
        %v1541 = vlaneseq
        %v1542 = vshrl.u32 %v1541, 7
        %v1543 = vsub.s32 0, %v1542
        %v1544 = vrot.slane %v1509, %v1543
        %v1546 = vadd.f32 %v1538, %v1544
        %v1547 = vadd.f32 %v1539, %v1544
        %v1548 = vpack.c.bf16 %v1547, %v1546
        %v1549 = vld [vmem:[#allocation12] sm:$0xff]
        %v1550 = vld [vmem:[#allocation12 + $0x8] sm:$0xff]
        %v1551 = vld [vmem:[#allocation12 + $0x10] sm:$0xff]
        %v1552 = vld [vmem:[#allocation12 + $0x18] sm:$0xff]
        %v1553 = vld [vmem:[#allocation12 + $0x20] sm:$0xff]
        %v1554 = vld [vmem:[#allocation12 + $0x28] sm:$0xff]
        %v1555 = vld [vmem:[#allocation12 + $0x30] sm:$0xff]
        %v1556 = vld [vmem:[#allocation12 + $0x38] sm:$0xff]
        %v1557 = vld [vmem:[#allocation12 + $0x40] sm:$0xff]
        %v1558 = vld [vmem:[#allocation12 + $0x48] sm:$0xff]
        %v1559 = vld [vmem:[#allocation12 + $0x50] sm:$0xff]
        %v1560 = vld [vmem:[#allocation12 + $0x58] sm:$0xff]
        %v1561 = vld [vmem:[#allocation12 + $0x60] sm:$0xff]
        %v1562 = vld [vmem:[#allocation12 + $0x68] sm:$0xff]
        %v1563 = vld [vmem:[#allocation12 + $0x70] sm:$0xff]
        %v1564 = vld [vmem:[#allocation12 + $0x78] sm:$0xff]
        %v1565 = vld [vmem:[#allocation12 + $0x80] sm:$0xff]
        %v1566 = vld [vmem:[#allocation12 + $0x88] sm:$0xff]
        %v1567 = vld [vmem:[#allocation12 + $0x90] sm:$0xff]
        %v1568 = vld [vmem:[#allocation12 + $0x98] sm:$0xff]
        %v1569 = vld [vmem:[#allocation12 + $0xa0] sm:$0xff]
        %v1570 = vld [vmem:[#allocation12 + $0xa8] sm:$0xff]
        %v1571 = vld [vmem:[#allocation12 + $0xb0] sm:$0xff]
        %v1572 = vld [vmem:[#allocation12 + $0xb8] sm:$0xff]
        %v1573 = vld [vmem:[#allocation12 + $0xc0] sm:$0xff]
        %v1574 = vld [vmem:[#allocation12 + $0xc8] sm:$0xff]
        %v1575 = vld [vmem:[#allocation12 + $0xd0] sm:$0xff]
        %v1576 = vld [vmem:[#allocation12 + $0xd8] sm:$0xff]
        %v1577 = vld [vmem:[#allocation12 + $0xe0] sm:$0xff]
        %v1578 = vld [vmem:[#allocation12 + $0xe8] sm:$0xff]
        %v1579 = vld [vmem:[#allocation12 + $0xf0] sm:$0xff]
        %v1580 = vld [vmem:[#allocation12 + $0xf8] sm:$0xff]
        %v1581 = vld [vmem:[%s10] sm:$0xf]
        %v1583 = vlaneseq
        %v1584 = vshrl.u32 %v1583, 7
        %v1585 = vsub.s32 0, %v1584
        %v1586 = vrot.slane %v1581, %v1585
        %v1587 = vlaneseq
        %v1588 = vshrl.u32 %v1587, 7
        %v1589 = vsub.s32 1, %v1588
        %v1590 = vrot.slane %v1581, %v1589
        %v1591 = vlaneseq
        %v1592 = vshrl.u32 %v1591, 7
        %v1593 = vsub.s32 2, %v1592
        %v1594 = vrot.slane %v1581, %v1593
        %v1595 = vlaneseq
        %v1596 = vshrl.u32 %v1595, 7
        %v1597 = vsub.s32 3, %v1596
        %v1598 = vrot.slane %v1581, %v1597
        %v1635 = vunpack.c.l.b16 %v1549
        %v1636 = vunpack.c.h.b16 %v1549
        %v1637 = vunpack.c.l.b16 %v1550
        %v1638 = vunpack.c.h.b16 %v1550
        %v1639 = vunpack.c.l.b16 %v1551
        %v1640 = vunpack.c.h.b16 %v1551
        %v1641 = vunpack.c.l.b16 %v1552
        %v1642 = vunpack.c.h.b16 %v1552
        %v1643 = vunpack.c.l.b16 %v1553
        %v1644 = vunpack.c.h.b16 %v1553
        %v1645 = vunpack.c.l.b16 %v1554
        %v1646 = vunpack.c.h.b16 %v1554
        %v1647 = vunpack.c.l.b16 %v1555
        %v1648 = vunpack.c.h.b16 %v1555
        %v1649 = vunpack.c.l.b16 %v1556
        %v1650 = vunpack.c.h.b16 %v1556
        %v1651 = vunpack.c.l.b16 %v1557
        %v1652 = vunpack.c.h.b16 %v1557
        %v1653 = vunpack.c.l.b16 %v1558
        %v1654 = vunpack.c.h.b16 %v1558
        %v1655 = vunpack.c.l.b16 %v1559
        %v1656 = vunpack.c.h.b16 %v1559
        %v1657 = vunpack.c.l.b16 %v1560
        %v1658 = vunpack.c.h.b16 %v1560
        %v1659 = vunpack.c.l.b16 %v1561
        %v1660 = vunpack.c.h.b16 %v1561
        %v1661 = vunpack.c.l.b16 %v1562
        %v1662 = vunpack.c.h.b16 %v1562
        %v1663 = vunpack.c.l.b16 %v1563
        %v1664 = vunpack.c.h.b16 %v1563
        %v1665 = vunpack.c.l.b16 %v1564
        %v1666 = vunpack.c.h.b16 %v1564
        %v1667 = vunpack.c.l.b16 %v1565
        %v1668 = vunpack.c.h.b16 %v1565
        %v1669 = vunpack.c.l.b16 %v1566
        %v1670 = vunpack.c.h.b16 %v1566
        %v1671 = vunpack.c.l.b16 %v1567
        %v1672 = vunpack.c.h.b16 %v1567
        %v1673 = vunpack.c.l.b16 %v1568
        %v1674 = vunpack.c.h.b16 %v1568
        %v1675 = vunpack.c.l.b16 %v1569
        %v1676 = vunpack.c.h.b16 %v1569
        %v1677 = vunpack.c.l.b16 %v1570
        %v1678 = vunpack.c.h.b16 %v1570
        %v1679 = vunpack.c.l.b16 %v1571
        %v1680 = vunpack.c.h.b16 %v1571
        %v1681 = vunpack.c.l.b16 %v1572
        %v1682 = vunpack.c.h.b16 %v1572
        %v1683 = vunpack.c.l.b16 %v1573
        %v1684 = vunpack.c.h.b16 %v1573
        %v1685 = vunpack.c.l.b16 %v1574
        %v1686 = vunpack.c.h.b16 %v1574
        %v1687 = vunpack.c.l.b16 %v1575
        %v1688 = vunpack.c.h.b16 %v1575
        %v1689 = vunpack.c.l.b16 %v1576
        %v1690 = vunpack.c.h.b16 %v1576
        %v1691 = vunpack.c.l.b16 %v1577
        %v1692 = vunpack.c.h.b16 %v1577
        %v1693 = vunpack.c.l.b16 %v1578
        %v1694 = vunpack.c.h.b16 %v1578
        %v1695 = vunpack.c.l.b16 %v1579
        %v1696 = vunpack.c.h.b16 %v1579
        %v1697 = vunpack.c.l.b16 %v1580
        %v1698 = vunpack.c.h.b16 %v1580
        %v1699 = vpack.c.b16 %v1639, %v1635
        %v1700 = vpack.c.b16 %v1640, %v1636
        %v1701 = vpack.c.b16 %v1641, %v1637
        %v1702 = vpack.c.b16 %v1642, %v1638
        %v1703 = vpack.c.b16 %v1647, %v1643
        %v1704 = vpack.c.b16 %v1648, %v1644
        %v1705 = vpack.c.b16 %v1649, %v1645
        %v1706 = vpack.c.b16 %v1650, %v1646
        %v1707 = vpack.c.b16 %v1655, %v1651
        %v1708 = vpack.c.b16 %v1656, %v1652
        %v1709 = vpack.c.b16 %v1657, %v1653
        %v1710 = vpack.c.b16 %v1658, %v1654
        %v1711 = vpack.c.b16 %v1663, %v1659
        %v1712 = vpack.c.b16 %v1664, %v1660
        %v1713 = vpack.c.b16 %v1665, %v1661
        %v1714 = vpack.c.b16 %v1666, %v1662
        %v1715 = vpack.c.b16 %v1671, %v1667
        %v1716 = vpack.c.b16 %v1672, %v1668
        %v1717 = vpack.c.b16 %v1673, %v1669
        %v1718 = vpack.c.b16 %v1674, %v1670
        %v1719 = vpack.c.b16 %v1679, %v1675
        %v1720 = vpack.c.b16 %v1680, %v1676
        %v1721 = vpack.c.b16 %v1681, %v1677
        %v1722 = vpack.c.b16 %v1682, %v1678
        %v1723 = vpack.c.b16 %v1687, %v1683
        %v1724 = vpack.c.b16 %v1688, %v1684
        %v1725 = vpack.c.b16 %v1689, %v1685
        %v1726 = vpack.c.b16 %v1690, %v1686
        %v1727 = vpack.c.b16 %v1695, %v1691
        %v1728 = vpack.c.b16 %v1696, %v1692
        %v1729 = vpack.c.b16 %v1697, %v1693
        %v1730 = vpack.c.b16 %v1698, %v1694
        %1763 = vmatprep.subr.bf16.mxu0 %v1700
        %1764 = vmatpush1.bf16.msra.mxu0 %v1699
        %1765 = vmatprep.subr.bf16.mxu0 %v1704
        %1766 = vmatpush1.bf16.msra.mxu0 %v1703
        %1767 = vmatprep.subr.bf16.mxu0 %v1708
        %1768 = vmatpush1.bf16.msra.mxu0 %v1707
        %1769 = vmatprep.subr.bf16.mxu0 %v1712
        %1770 = vmatpush1.bf16.msra.mxu0 %v1711
        %1771 = vmatprep.subr.bf16.mxu0 %v1716
        %1772 = vmatpush1.bf16.msra.mxu0 %v1715
        %1773 = vmatprep.subr.bf16.mxu0 %v1720
        %1774 = vmatpush1.bf16.msra.mxu0 %v1719
        %1775 = vmatprep.subr.bf16.mxu0 %v1724
        %1776 = vmatpush1.bf16.msra.mxu0 %v1723
        %1777 = vmatprep.subr.bf16.mxu0 %v1728
        %1778 = vmatpush1.bf16.msra.mxu0 %v1727
        %1779 = vmatprep.subr.bf16.mxu0 0
        %1780 = vmatpush1.bf16.msra.mxu0 0
        %1781 = vmatprep.subr.bf16.mxu0 0
        %1782 = vmatpush1.bf16.msra.mxu0 0
        %1783 = vmatprep.subr.bf16.mxu0 0
        %1784 = vmatpush1.bf16.msra.mxu0 0
        %1785 = vmatprep.subr.bf16.mxu0 0
        %1786 = vmatpush1.bf16.msra.mxu0 0
        %1787 = vmatprep.subr.bf16.mxu0 0
        %1788 = vmatpush1.bf16.msra.mxu0 0
        %1789 = vmatprep.subr.bf16.mxu0 0
        %1790 = vmatpush1.bf16.msra.mxu0 0
        %1791 = vmatprep.subr.bf16.mxu0 0
        %1792 = vmatpush1.bf16.msra.mxu0 0
        %1793 = vmatprep.subr.bf16.mxu0 0
        %1794 = vmatpush1.bf16.msra.mxu0 0
        %1795 = vmatprep.mubr.bf16.mxu0 0
        %1796 = vmatmul.mubr.bf16.gmra.mrb[0].mxu0 %v1548
        %v1797 = vpop.f32.mrb[0].mxu0
        %v1798 = vadd.f32 %v1586, %v1797
        %v1799 = vpop.f32.mrb[0].mxu0
        %v1800 = vadd.f32 %v1590, %v1799
        %v1801 = vpop.f32.mrb[0].mxu0
        %v1802 = vadd.f32 %v1586, %v1801
        %v1803 = vpop.f32.mrb[0].mxu0
        %v1804 = vadd.f32 %v1590, %v1803
        %1805 = vdwg.mxu0
        %1806 = vmatprep.subr.bf16.mxu0 %v1702
        %1807 = vmatpush1.bf16.msra.mxu0 %v1701
        %1808 = vmatprep.subr.bf16.mxu0 %v1706
        %1809 = vmatpush1.bf16.msra.mxu0 %v1705
        %1810 = vmatprep.subr.bf16.mxu0 %v1710
        %1811 = vmatpush1.bf16.msra.mxu0 %v1709
        %1812 = vmatprep.subr.bf16.mxu0 %v1714
        %1813 = vmatpush1.bf16.msra.mxu0 %v1713
        %1814 = vmatprep.subr.bf16.mxu0 %v1718
        %1815 = vmatpush1.bf16.msra.mxu0 %v1717
        %1816 = vmatprep.subr.bf16.mxu0 %v1722
        %1817 = vmatpush1.bf16.msra.mxu0 %v1721
        %1818 = vmatprep.subr.bf16.mxu0 %v1726
        %1819 = vmatpush1.bf16.msra.mxu0 %v1725
        %1820 = vmatprep.subr.bf16.mxu0 %v1730
        %1821 = vmatpush1.bf16.msra.mxu0 %v1729
        %1822 = vmatprep.subr.bf16.mxu0 0
        %1823 = vmatpush1.bf16.msra.mxu0 0
        %1824 = vmatprep.subr.bf16.mxu0 0
        %1825 = vmatpush1.bf16.msra.mxu0 0
        %1826 = vmatprep.subr.bf16.mxu0 0
        %1827 = vmatpush1.bf16.msra.mxu0 0
        %1828 = vmatprep.subr.bf16.mxu0 0
        %1829 = vmatpush1.bf16.msra.mxu0 0
        %1830 = vmatprep.subr.bf16.mxu0 0
        %1831 = vmatpush1.bf16.msra.mxu0 0
        %1832 = vmatprep.subr.bf16.mxu0 0
        %1833 = vmatpush1.bf16.msra.mxu0 0
        %1834 = vmatprep.subr.bf16.mxu0 0
        %1835 = vmatpush1.bf16.msra.mxu0 0
        %1836 = vmatprep.subr.bf16.mxu0 0
        %1837 = vmatpush1.bf16.msra.mxu0 0
        %1838 = vmatprep.mubr.bf16.mxu0 0
        %1839 = vmatmul.mubr.bf16.gmra.mrb[0].mxu0 %v1548
        %v1840 = vpop.f32.mrb[0].mxu0
        %v1841 = vadd.f32 %v1594, %v1840
        %v1842 = vpop.f32.mrb[0].mxu0
        %v1843 = vadd.f32 %v1598, %v1842
        %v1844 = vpop.f32.mrb[0].mxu0
        %v1845 = vadd.f32 %v1594, %v1844
        %v1846 = vpop.f32.mrb[0].mxu0
        %v1847 = vadd.f32 %v1598, %v1846
        %1848 = vdwg.mxu0
        %v1849 = vmul.f32 %v1798, 0.5
        %v1850 = vmul.f32 %v1800, 0.5
        %v1851 = vmul.f32 %v1841, 0.5
        %v1852 = vmul.f32 %v1843, 0.5
        %v1853 = vmul.f32 %v1802, 0.5
        %v1854 = vmul.f32 %v1804, 0.5
        %v1855 = vmul.f32 %v1845, 0.5
        %v1856 = vmul.f32 %v1847, 0.5
        %v1857 = vmul.f32 %v1798, %v1798
        %v1858 = vmul.f32 %v1800, %v1800
        %v1859 = vmul.f32 %v1841, %v1841
        %v1860 = vmul.f32 %v1843, %v1843
        %v1861 = vmul.f32 %v1802, %v1802
        %v1862 = vmul.f32 %v1804, %v1804
        %v1863 = vmul.f32 %v1845, %v1845
        %v1864 = vmul.f32 %v1847, %v1847
        %v1865 = vmul.f32 %v1798, %v1857
        %v1866 = vmul.f32 %v1800, %v1858
        %v1867 = vmul.f32 %v1841, %v1859
        %v1868 = vmul.f32 %v1843, %v1860
        %v1869 = vmul.f32 %v1802, %v1861
        %v1870 = vmul.f32 %v1804, %v1862
        %v1871 = vmul.f32 %v1845, %v1863
        %v1872 = vmul.f32 %v1847, %v1864
        %v1873 = vmul.f32 %v1865, 0.044715
        %v1874 = vmul.f32 %v1866, 0.044715
        %v1875 = vmul.f32 %v1867, 0.044715
        %v1876 = vmul.f32 %v1868, 0.044715
        %v1877 = vmul.f32 %v1869, 0.044715
        %v1878 = vmul.f32 %v1870, 0.044715
        %v1879 = vmul.f32 %v1871, 0.044715
        %v1880 = vmul.f32 %v1872, 0.044715
        %v1881 = vadd.f32 %v1798, %v1873
        %v1882 = vadd.f32 %v1800, %v1874
        %v1883 = vadd.f32 %v1841, %v1875
        %v1884 = vadd.f32 %v1843, %v1876
        %v1885 = vadd.f32 %v1802, %v1877
        %v1886 = vadd.f32 %v1804, %v1878
        %v1887 = vadd.f32 %v1845, %v1879
        %v1888 = vadd.f32 %v1847, %v1880
        %v1889 = vmul.f32 %v1881, 0.7978846
        %v1890 = vmul.f32 %v1882, 0.7978846
        %v1891 = vmul.f32 %v1883, 0.7978846
        %v1892 = vmul.f32 %v1884, 0.7978846
        %v1893 = vmul.f32 %v1885, 0.7978846
        %v1894 = vmul.f32 %v1886, 0.7978846
        %v1895 = vmul.f32 %v1887, 0.7978846
        %v1896 = vmul.f32 %v1888, 0.7978846
        %v1897 = vtanh.pop %v1889
        %v1898 = vtanh.pop %v1890
        %v1899 = vtanh.pop %v1891
        %v1900 = vtanh.pop %v1892
        %v1901 = vtanh.pop %v1893
        %v1902 = vtanh.pop %v1894
        %v1903 = vtanh.pop %v1895
        %v1904 = vtanh.pop %v1896
        %v1905 = vadd.f32 %v1897, 1.0
        %v1906 = vadd.f32 %v1898, 1.0
        %v1907 = vadd.f32 %v1899, 1.0
        %v1908 = vadd.f32 %v1900, 1.0
        %v1909 = vadd.f32 %v1901, 1.0
        %v1910 = vadd.f32 %v1902, 1.0
        %v1911 = vadd.f32 %v1903, 1.0
        %v1912 = vadd.f32 %v1904, 1.0
        %v1913 = vmul.f32 %v1849, %v1905
        %v1914 = vmul.f32 %v1850, %v1906
        %v1915 = vmul.f32 %v1851, %v1907
        %v1916 = vmul.f32 %v1852, %v1908
        %v1917 = vmul.f32 %v1853, %v1909
        %v1918 = vmul.f32 %v1854, %v1910
        %v1919 = vmul.f32 %v1855, %v1911
        %v1920 = vmul.f32 %v1856, %v1912
        %v1921 = vpack.c.bf16 %v1917, %v1913
        %v1922 = vpack.c.bf16 %v1918, %v1914
        %v1923 = vpack.c.bf16 %v1919, %v1915
        %v1924 = vpack.c.bf16 %v1920, %v1916
        %v1925 = vld [vmem:[#allocation14] sm:$0xf]
        %v1926 = vld [vmem:[#allocation14 + $0x4] sm:$0xf]
        %v1927 = vld [vmem:[#allocation14 + $0x8] sm:$0xf]
        %v1928 = vld [vmem:[#allocation14 + $0xc] sm:$0xf]
        %v1929 = vld [vmem:[#allocation14 + $0x10] sm:$0xf]
        %v1930 = vld [vmem:[#allocation14 + $0x14] sm:$0xf]
        %v1931 = vld [vmem:[#allocation14 + $0x18] sm:$0xf]
        %v1932 = vld [vmem:[#allocation14 + $0x1c] sm:$0xf]
        %v1933 = vld [vmem:[#allocation14 + $0x20] sm:$0xf]
        %v1934 = vld [vmem:[#allocation14 + $0x24] sm:$0xf]
        %v1935 = vld [vmem:[#allocation14 + $0x28] sm:$0xf]
        %v1936 = vld [vmem:[#allocation14 + $0x2c] sm:$0xf]
        %v1937 = vld [vmem:[#allocation14 + $0x30] sm:$0xf]
        %v1938 = vld [vmem:[#allocation14 + $0x34] sm:$0xf]
        %v1939 = vld [vmem:[#allocation14 + $0x38] sm:$0xf]
        %v1940 = vld [vmem:[#allocation14 + $0x3c] sm:$0xf]
        %v1941 = vld [vmem:[#allocation14 + $0x40] sm:$0xf]
        %v1942 = vld [vmem:[#allocation14 + $0x44] sm:$0xf]
        %v1943 = vld [vmem:[#allocation14 + $0x48] sm:$0xf]
        %v1944 = vld [vmem:[#allocation14 + $0x4c] sm:$0xf]
        %v1945 = vld [vmem:[#allocation14 + $0x50] sm:$0xf]
        %v1946 = vld [vmem:[#allocation14 + $0x54] sm:$0xf]
        %v1947 = vld [vmem:[#allocation14 + $0x58] sm:$0xf]
        %v1948 = vld [vmem:[#allocation14 + $0x5c] sm:$0xf]
        %v1949 = vld [vmem:[#allocation14 + $0x60] sm:$0xf]
        %v1950 = vld [vmem:[#allocation14 + $0x64] sm:$0xf]
        %v1951 = vld [vmem:[#allocation14 + $0x68] sm:$0xf]
        %v1952 = vld [vmem:[#allocation14 + $0x6c] sm:$0xf]
        %v1953 = vld [vmem:[#allocation14 + $0x70] sm:$0xf]
        %v1954 = vld [vmem:[#allocation14 + $0x74] sm:$0xf]
        %v1955 = vld [vmem:[#allocation14 + $0x78] sm:$0xf]
        %v1956 = vld [vmem:[#allocation14 + $0x7c] sm:$0xf]
        %v1957 = vld [vmem:[#allocation14 + $0x80] sm:$0xf]
        %v1958 = vld [vmem:[#allocation14 + $0x84] sm:$0xf]
        %v1959 = vld [vmem:[#allocation14 + $0x88] sm:$0xf]
        %v1960 = vld [vmem:[#allocation14 + $0x8c] sm:$0xf]
        %v1961 = vld [vmem:[#allocation14 + $0x90] sm:$0xf]
        %v1962 = vld [vmem:[#allocation14 + $0x94] sm:$0xf]
        %v1963 = vld [vmem:[#allocation14 + $0x98] sm:$0xf]
        %v1964 = vld [vmem:[#allocation14 + $0x9c] sm:$0xf]
        %v1965 = vld [vmem:[#allocation14 + $0xa0] sm:$0xf]
        %v1966 = vld [vmem:[#allocation14 + $0xa4] sm:$0xf]
        %v1967 = vld [vmem:[#allocation14 + $0xa8] sm:$0xf]
        %v1968 = vld [vmem:[#allocation14 + $0xac] sm:$0xf]
        %v1969 = vld [vmem:[#allocation14 + $0xb0] sm:$0xf]
        %v1970 = vld [vmem:[#allocation14 + $0xb4] sm:$0xf]
        %v1971 = vld [vmem:[#allocation14 + $0xb8] sm:$0xf]
        %v1972 = vld [vmem:[#allocation14 + $0xbc] sm:$0xf]
        %v1973 = vld [vmem:[#allocation14 + $0xc0] sm:$0xf]
        %v1974 = vld [vmem:[#allocation14 + $0xc4] sm:$0xf]
        %v1975 = vld [vmem:[#allocation14 + $0xc8] sm:$0xf]
        %v1976 = vld [vmem:[#allocation14 + $0xcc] sm:$0xf]
        %v1977 = vld [vmem:[#allocation14 + $0xd0] sm:$0xf]
        %v1978 = vld [vmem:[#allocation14 + $0xd4] sm:$0xf]
        %v1979 = vld [vmem:[#allocation14 + $0xd8] sm:$0xf]
        %v1980 = vld [vmem:[#allocation14 + $0xdc] sm:$0xf]
        %v1981 = vld [vmem:[#allocation14 + $0xe0] sm:$0xf]
        %v1982 = vld [vmem:[#allocation14 + $0xe4] sm:$0xf]
        %v1983 = vld [vmem:[#allocation14 + $0xe8] sm:$0xf]
        %v1984 = vld [vmem:[#allocation14 + $0xec] sm:$0xf]
        %v1985 = vld [vmem:[#allocation14 + $0xf0] sm:$0xf]
        %v1986 = vld [vmem:[#allocation14 + $0xf4] sm:$0xf]
        %v1987 = vld [vmem:[#allocation14 + $0xf8] sm:$0xf]
        %v1988 = vld [vmem:[#allocation14 + $0xfc] sm:$0xf]
        %v1989 = vld [vmem:[%s12] sm:$0x1]
        %v1991 = vlaneseq
        %v1992 = vshrl.u32 %v1991, 7
        %v1993 = vsub.s32 0, %v1992
        %v1994 = vrot.slane %v1989, %v1993
        %v2060 = vunpack.c.l.b16 %v1925
        %v2061 = vunpack.c.l.b16 %v1926
        %v2062 = vunpack.c.l.b16 %v1927
        %v2063 = vunpack.c.l.b16 %v1928
        %v2064 = vunpack.c.l.b16 %v1929
        %v2065 = vunpack.c.l.b16 %v1930
        %v2066 = vunpack.c.l.b16 %v1931
        %v2067 = vunpack.c.l.b16 %v1932
        %v2068 = vunpack.c.l.b16 %v1933
        %v2069 = vunpack.c.l.b16 %v1934
        %v2070 = vunpack.c.l.b16 %v1935
        %v2071 = vunpack.c.l.b16 %v1936
        %v2072 = vunpack.c.l.b16 %v1937
        %v2073 = vunpack.c.l.b16 %v1938
        %v2074 = vunpack.c.l.b16 %v1939
        %v2075 = vunpack.c.l.b16 %v1940
        %v2076 = vunpack.c.l.b16 %v1941
        %v2077 = vunpack.c.l.b16 %v1942
        %v2078 = vunpack.c.l.b16 %v1943
        %v2079 = vunpack.c.l.b16 %v1944
        %v2080 = vunpack.c.l.b16 %v1945
        %v2081 = vunpack.c.l.b16 %v1946
        %v2082 = vunpack.c.l.b16 %v1947
        %v2083 = vunpack.c.l.b16 %v1948
        %v2084 = vunpack.c.l.b16 %v1949
        %v2085 = vunpack.c.l.b16 %v1950
        %v2086 = vunpack.c.l.b16 %v1951
        %v2087 = vunpack.c.l.b16 %v1952
        %v2088 = vunpack.c.l.b16 %v1953
        %v2089 = vunpack.c.l.b16 %v1954
        %v2090 = vunpack.c.l.b16 %v1955
        %v2091 = vunpack.c.l.b16 %v1956
        %v2092 = vunpack.c.l.b16 %v1957
        %v2093 = vunpack.c.l.b16 %v1958
        %v2094 = vunpack.c.l.b16 %v1959
        %v2095 = vunpack.c.l.b16 %v1960
        %v2096 = vunpack.c.l.b16 %v1961
        %v2097 = vunpack.c.l.b16 %v1962
        %v2098 = vunpack.c.l.b16 %v1963
        %v2099 = vunpack.c.l.b16 %v1964
        %v2100 = vunpack.c.l.b16 %v1965
        %v2101 = vunpack.c.l.b16 %v1966
        %v2102 = vunpack.c.l.b16 %v1967
        %v2103 = vunpack.c.l.b16 %v1968
        %v2104 = vunpack.c.l.b16 %v1969
        %v2105 = vunpack.c.l.b16 %v1970
        %v2106 = vunpack.c.l.b16 %v1971
        %v2107 = vunpack.c.l.b16 %v1972
        %v2108 = vunpack.c.l.b16 %v1973
        %v2109 = vunpack.c.l.b16 %v1974
        %v2110 = vunpack.c.l.b16 %v1975
        %v2111 = vunpack.c.l.b16 %v1976
        %v2112 = vunpack.c.l.b16 %v1977
        %v2113 = vunpack.c.l.b16 %v1978
        %v2114 = vunpack.c.l.b16 %v1979
        %v2115 = vunpack.c.l.b16 %v1980
        %v2116 = vunpack.c.l.b16 %v1981
        %v2117 = vunpack.c.l.b16 %v1982
        %v2118 = vunpack.c.l.b16 %v1983
        %v2119 = vunpack.c.l.b16 %v1984
        %v2120 = vunpack.c.l.b16 %v1985
        %v2121 = vunpack.c.l.b16 %v1986
        %v2122 = vunpack.c.l.b16 %v1987
        %v2123 = vunpack.c.l.b16 %v1988
        %v2124 = vpack.c.b16 %v2061, %v2060
        %v2125 = vpack.c.b16 %v2063, %v2062
        %v2126 = vpack.c.b16 %v2065, %v2064
        %v2127 = vpack.c.b16 %v2067, %v2066
        %v2128 = vpack.c.b16 %v2069, %v2068
        %v2129 = vpack.c.b16 %v2071, %v2070
        %v2130 = vpack.c.b16 %v2073, %v2072
        %v2131 = vpack.c.b16 %v2075, %v2074
        %v2132 = vpack.c.b16 %v2077, %v2076
        %v2133 = vpack.c.b16 %v2079, %v2078
        %v2134 = vpack.c.b16 %v2081, %v2080
        %v2135 = vpack.c.b16 %v2083, %v2082
        %v2136 = vpack.c.b16 %v2085, %v2084
        %v2137 = vpack.c.b16 %v2087, %v2086
        %v2138 = vpack.c.b16 %v2089, %v2088
        %v2139 = vpack.c.b16 %v2091, %v2090
        %v2140 = vpack.c.b16 %v2093, %v2092
        %v2141 = vpack.c.b16 %v2095, %v2094
        %v2142 = vpack.c.b16 %v2097, %v2096
        %v2143 = vpack.c.b16 %v2099, %v2098
        %v2144 = vpack.c.b16 %v2101, %v2100
        %v2145 = vpack.c.b16 %v2103, %v2102
        %v2146 = vpack.c.b16 %v2105, %v2104
        %v2147 = vpack.c.b16 %v2107, %v2106
        %v2148 = vpack.c.b16 %v2109, %v2108
        %v2149 = vpack.c.b16 %v2111, %v2110
        %v2150 = vpack.c.b16 %v2113, %v2112
        %v2151 = vpack.c.b16 %v2115, %v2114
        %v2152 = vpack.c.b16 %v2117, %v2116
        %v2153 = vpack.c.b16 %v2119, %v2118
        %v2154 = vpack.c.b16 %v2121, %v2120
        %v2155 = vpack.c.b16 %v2123, %v2122
        %2188 = vmatprep.subr.bf16.mxu0 0
        %2189 = vmatpush1.bf16.msra.mxu0 %v2124
        %2190 = vmatprep.subr.bf16.mxu0 0
        %2191 = vmatpush1.bf16.msra.mxu0 %v2125
        %2192 = vmatprep.subr.bf16.mxu0 0
        %2193 = vmatpush1.bf16.msra.mxu0 %v2126
        %2194 = vmatprep.subr.bf16.mxu0 0
        %2195 = vmatpush1.bf16.msra.mxu0 %v2127
        %2196 = vmatprep.subr.bf16.mxu0 0
        %2197 = vmatpush1.bf16.msra.mxu0 %v2128
        %2198 = vmatprep.subr.bf16.mxu0 0
        %2199 = vmatpush1.bf16.msra.mxu0 %v2129
        %2200 = vmatprep.subr.bf16.mxu0 0
        %2201 = vmatpush1.bf16.msra.mxu0 %v2130
        %2202 = vmatprep.subr.bf16.mxu0 0
        %2203 = vmatpush1.bf16.msra.mxu0 %v2131
        %2204 = vmatprep.subr.bf16.mxu0 0
        %2205 = vmatpush1.bf16.msra.mxu0 %v2132
        %2206 = vmatprep.subr.bf16.mxu0 0
        %2207 = vmatpush1.bf16.msra.mxu0 %v2133
        %2208 = vmatprep.subr.bf16.mxu0 0
        %2209 = vmatpush1.bf16.msra.mxu0 %v2134
        %2210 = vmatprep.subr.bf16.mxu0 0
        %2211 = vmatpush1.bf16.msra.mxu0 %v2135
        %2212 = vmatprep.subr.bf16.mxu0 0
        %2213 = vmatpush1.bf16.msra.mxu0 %v2136
        %2214 = vmatprep.subr.bf16.mxu0 0
        %2215 = vmatpush1.bf16.msra.mxu0 %v2137
        %2216 = vmatprep.subr.bf16.mxu0 0
        %2217 = vmatpush1.bf16.msra.mxu0 %v2138
        %2218 = vmatprep.subr.bf16.mxu0 0
        %2219 = vmatpush1.bf16.msra.mxu0 %v2139
        %2220 = vmatprep.mubr.bf16.mxu0 %v1922
        %2221 = vmatmul.mubr.bf16.gmra.mrb[0].mxu0 %v1921
        %v2222 = vpop.f32.mrb[0].mxu0
        %v2223 = vadd.f32 %v1994, %v2222
        %v2224 = vpop.f32.mrb[0].mxu0
        %v2225 = vpop.f32.mrb[0].mxu0
        %v2226 = vadd.f32 %v1994, %v2225
        %v2227 = vpop.f32.mrb[0].mxu0
        %2228 = vdwg.mxu0
        %2229 = vmatprep.subr.bf16.mxu0 0
        %2230 = vmatpush1.bf16.msra.mxu0 %v2140
        %2231 = vmatprep.subr.bf16.mxu0 0
        %2232 = vmatpush1.bf16.msra.mxu0 %v2141
        %2233 = vmatprep.subr.bf16.mxu0 0
        %2234 = vmatpush1.bf16.msra.mxu0 %v2142
        %2235 = vmatprep.subr.bf16.mxu0 0
        %2236 = vmatpush1.bf16.msra.mxu0 %v2143
        %2237 = vmatprep.subr.bf16.mxu0 0
        %2238 = vmatpush1.bf16.msra.mxu0 %v2144
        %2239 = vmatprep.subr.bf16.mxu0 0
        %2240 = vmatpush1.bf16.msra.mxu0 %v2145
        %2241 = vmatprep.subr.bf16.mxu0 0
        %2242 = vmatpush1.bf16.msra.mxu0 %v2146
        %2243 = vmatprep.subr.bf16.mxu0 0
        %2244 = vmatpush1.bf16.msra.mxu0 %v2147
        %2245 = vmatprep.subr.bf16.mxu0 0
        %2246 = vmatpush1.bf16.msra.mxu0 %v2148
        %2247 = vmatprep.subr.bf16.mxu0 0
        %2248 = vmatpush1.bf16.msra.mxu0 %v2149
        %2249 = vmatprep.subr.bf16.mxu0 0
        %2250 = vmatpush1.bf16.msra.mxu0 %v2150
        %2251 = vmatprep.subr.bf16.mxu0 0
        %2252 = vmatpush1.bf16.msra.mxu0 %v2151
        %2253 = vmatprep.subr.bf16.mxu0 0
        %2254 = vmatpush1.bf16.msra.mxu0 %v2152
        %2255 = vmatprep.subr.bf16.mxu0 0
        %2256 = vmatpush1.bf16.msra.mxu0 %v2153
        %2257 = vmatprep.subr.bf16.mxu0 0
        %2258 = vmatpush1.bf16.msra.mxu0 %v2154
        %2259 = vmatprep.subr.bf16.mxu0 0
        %2260 = vmatpush1.bf16.msra.mxu0 %v2155
        %2261 = vmatprep.mubr.bf16.mxu0 %v1924
        %2262 = vmatmul.mubr.bf16.gmra.mrb[0].mxu0 %v1923
        %v2263 = vpop.f32.mrb[0].mxu0
        %v2264 = vadd.f32 %v2223, %v2263
        %v2265 = vpop.f32.mrb[0].mxu0
        %v2266 = vpop.f32.mrb[0].mxu0
        %v2267 = vadd.f32 %v2226, %v2266
        %v2268 = vpop.f32.mrb[0].mxu0
        %2269 = vdwg.mxu0
        %v2270 = vadd.f32 %v1506, %v2264
        %v2271 = vadd.f32 %v1507, %v2267
        %2272 = vst [vmem:[%s541] sm:$0xff] %v2270
        %2273 = vst [vmem:[%s541 + $0x8] sm:$0xff] %v2271
        %s2274 = sand.u32 %s319, 1
        %s2275 = scalar_lea.sflag [#allocation5], %s2274
        %s2276 = sand.u32 %s319, 1
        %s2277 = smul.addr %s2276, 16
        %s2278 = scalar_lea.vmem [#allocation15], %s2277
        // Predicated region
        $region101: #{tpu_custom_call.1} parent=71 // pred_check
          %p2279 = pneg %p329
        $region102: #{tpu_custom_call.1} parent=71 // pred_check_branch
          %2281 = sbr.rel (%p2279) target = $region104
        $region103: #{tpu_custom_call.1} parent=71 // pred_region
          %s2283 = ssub.s32 256, 256
          %2284 = vsyncadd %s2275, %s2283
          %s2285 = smul.addr %s33, 2
          %s2286 = smul.addr %s2285, 128
          %s2287 = scalar_lea.hbm %s13, %s2286
          %s2288 = sshll.u32 %s2278, 4
          %s2289 = int_to_ptr.vmem [resolvable:$true] %s2288
          %2294 = dma.vmem_to_hbm [thread:$0]  %s2289, 256, %s2287, %s2275, 128, 128, 8
        $region104: #{tpu_custom_call.1} parent=71 // pred_fallthru
          _
      $region72: #{tpu_custom_call.1} parent=5 // pred_fallthru
        _
      %p2295 = scmp.le.s32.totalorder 2, %s28
      // Predicated region
      $region105: #{tpu_custom_call.1} parent=5 // pred_check
        %p2296 = pneg %p2295
      $region106: #{tpu_custom_call.1} parent=5 // pred_check_branch
        %2298 = sbr.rel (%p2296) target = $region108
      $region107: #{tpu_custom_call.1} parent=5 // pred_region
        %s2299 = ssub.s32 %s28, 2
        // Predicated region
        $region109: #{tpu_custom_call.1} parent=107 // pred_check
          %p2300 = pneg %p335
        $region110: #{tpu_custom_call.1} parent=107 // pred_check_branch
          %2302 = sbr.rel (%p2300) target = $region112
        $region111: #{tpu_custom_call.1} parent=107 // pred_region
          %s2303 = sand.u32 %s320, 1
          %s2304 = scalar_lea.sflag [#allocation5], %s2303
          %s2305 = sand.u32 %s320, 1
          %s2306 = smul.addr %s2305, 16
          %s2307 = scalar_lea.vmem [#allocation15], %s2306
          %2308 = dma.done %s2304, 256
        $region112: #{tpu_custom_call.1} parent=107 // pred_fallthru
          _
      $region108: #{tpu_custom_call.1} parent=5 // pred_fallthru
        _
    $region6: #{tpu_custom_call.1} parent=1 // loop_footer
      %s32 = sadd.s32 1, %s28
    $region7: #{tpu_custom_call.1} parent=1 // loop_footer_branch
      %27 = sbr.rel target = $region3
    $region8: #{tpu_custom_call.1} parent=1 // loop_exit
      _
    %2309 = vsyncpa [#allocation4], 1
    %s2310 = scalar_lea.sflag [#allocation4], 1
    %2311 = vsyncpa %s2310, 1
    %2312 = vsyncpa [#allocation7], 1
    %2313 = vsyncpa [#allocation10], 1
    %2314 = vsyncpa [#allocation13], 1
    %2315 = vsyncpa [#allocation5], 1
    %s2316 = scalar_lea.sflag [#allocation5], 1
    %2317 = vsyncpa %s2316, 1

</llo_original>
